<compile_context>
chip_gen: v5e
topology: v5e:2x2
jax: 0.10.0
libtpu: 0.0.40
codegen_flags: <defaults>
</compile_context>

<pallas_src>
import functools

import jax
import jax.numpy as jnp
from jax.experimental import pallas as pl
from jax.experimental.pallas import tpu as pltpu

EPS = 1e-6
NEG_INF = -1.0e9          # exact masked_fill value used by the PyTorch module
BIG_POS = 3.0e38          # "no mask" fill (acts as identity under jnp.minimum)


def _round_up(n, m):
    return ((n + m - 1) // m) * m


# ----------------------------- in-kernel math helpers -------------------------
def _layernorm(x, gamma, beta):
    mean = jnp.mean(x, axis=-1, keepdims=True)
    var = jnp.mean((x - mean) ** 2, axis=-1, keepdims=True)
    return (x - mean) * jax.lax.rsqrt(var + EPS) * gamma + beta


def _gelu(x):
    # GELU (tanh approximation). NOTE: original code uses a custom GELU class not
    # shown in the spec; the standard tanh-approx GELU is assumed.
    return 0.5 * x * (1.0 + jnp.tanh(0.7978845608028654 * (x + 0.044715 * x * x * x)))


def _ff_out(x, gamma, beta, w1, b1, w2, b2, compute_dtype):
    """FeedForward(LayerNorm(x)) for a (rows, E) tile. f32 in/out, f32 accumulation."""
    y = _layernorm(x, gamma, beta).astype(compute_dtype)
    h = jnp.dot(y, w1, preferred_element_type=jnp.float32) + b1
    h = _gelu(h).astype(compute_dtype)
    return jnp.dot(h, w2, preferred_element_type=jnp.float32) + b2


def _attention_out(x, fill, gamma, beta, wq, bq, wk, bk, wv, bv, wo, bo,
                   num_heads, compute_dtype, approx_recip):
    """MultiHeadAttention(LayerNorm(x)) for one (S, E) slab.

    wq/wk/wv: (H, E, d_k), biases (H, 1, d_k), wo: (H, d_k, E), bo: (1, E).
    The output projection is accumulated per head (no concat / lane shuffles).
    """
    S, E = x.shape
    d_k = E // num_heads
    scale = 1.0 / (float(d_k) ** 0.5)
    y = _layernorm(x, gamma, beta).astype(compute_dtype)
    acc = jnp.zeros((S, E), jnp.float32)
    for h in range(num_heads):                     # static unroll over heads
        q = jnp.dot(y, wq[h], preferred_element_type=jnp.float32) + bq[h]
        k = jnp.dot(y, wk[h], preferred_element_type=jnp.float32) + bk[h]
        v = jnp.dot(y, wv[h], preferred_element_type=jnp.float32) + bv[h]
        logits = jnp.dot(q.astype(compute_dtype), k.astype(compute_dtype).T,
                         preferred_element_type=jnp.float32) * scale
        logits = jnp.minimum(logits, fill)         # == masked_fill(mask, -1e9)
        m = jnp.max(logits, axis=-1, keepdims=True)
        e = jnp.exp(logits - m)
        p = e * pl.reciprocal(jnp.sum(e, axis=-1, keepdims=True), approx=approx_recip)
        o_h = jnp.dot(p.astype(compute_dtype), v.astype(compute_dtype),
                      preferred_element_type=jnp.float32)
        acc = acc + jnp.dot(o_h.astype(compute_dtype), wo[h],
                            preferred_element_type=jnp.float32)
    return acc + bo


# ----------------------------- kernels ----------------------------------------
def _rff_kernel(compute_dtype, x_ref, g_ref, b_ref, w1_ref, b1_ref, w2_ref, b2_ref,
                o_ref):
    x = x_ref[...]                                                    # (TR, E)
    out = _ff_out(x, g_ref[...], b_ref[...], w1_ref[...], b1_ref[...],
                  w2_ref[...], b2_ref[...], compute_dtype)
    o_ref[...] = (x + out).astype(o_ref.dtype)    # dropout == identity (eval)


def _rsa_kernel(num_heads, compute_dtype, approx_recip,
                x_ref, fill_ref, g_ref, b_ref,
                wq_ref, bq_ref, wk_ref, bk_ref, wv_ref, bv_ref, wo_ref, bo_ref,
                o_ref):
    gamma, beta, bo = g_ref[...], b_ref[...], bo_ref[...]
    wq, bq = wq_ref[...], bq_ref[...]
    wk, bk = wk_ref[...], bk_ref[...]
    wv, bv = wv_ref[...], bv_ref[...]
    wo = wo_ref[...]
    for i in range(x_ref.shape[0]):               # static unroll: NB slabs / step
        x = x_ref[i]                                                  # (S, E)
        fill = fill_ref[i].astype(jnp.float32)                        # (S, S)
        out = _attention_out(x, fill, gamma, beta, wq, bq, wk, bk, wv, bv, wo, bo,
                             num_heads, compute_dtype, approx_recip)
        o_ref[i] = (x + out).astype(o_ref.dtype)  # dropout == identity (eval)


def _fused_block_kernel(num_heads, compute_dtype, approx_recip,
                        x_ref, fill_ref,
                        g1_ref, be1_ref, wq_ref, bq_ref, wk_ref, bk_ref,
                        wv_ref, bv_ref, wo_ref, bo_ref,
                        g2_ref, be2_ref, w1_ref, b1_ref, w2_ref, b2_ref,
                        o_ref):
    g1, be1, bo = g1_ref[...], be1_ref[...], bo_ref[...]
    wq, bq = wq_ref[...], bq_ref[...]
    wk, bk = wk_ref[...], bk_ref[...]
    wv, bv = wv_ref[...], bv_ref[...]
    wo = wo_ref[...]
    g2, be2 = g2_ref[...], be2_ref[...]
    w1, b1 = w1_ref[...], b1_ref[...]
    w2, b2 = w2_ref[...], b2_ref[...]
    for i in range(x_ref.shape[0]):
        x = x_ref[i]
        fill = fill_ref[i].astype(jnp.float32)
        x1 = x + _attention_out(x, fill, g1, be1, wq, bq, wk, bk, wv, bv, wo, bo,
                                num_heads, compute_dtype, approx_recip)
        x2 = x1 + _ff_out(x1, g2, be2, w1, b1, w2, b2, compute_dtype)
        o_ref[i] = x2.astype(o_ref.dtype)


# ----------------------------- parameter preparation --------------------------
def prepare_rff_params(p, compute_dtype=jnp.float32):
    """Pre-transpose / pre-reshape FeedForward params once (off the dispatch path)."""
    E = p["gamma"].shape[0]
    return dict(
        gamma=p["gamma"].reshape(1, E).astype(jnp.float32),
        beta=p["beta"].reshape(1, E).astype(jnp.float32),
        w1=jnp.asarray(p["w1"]).T.astype(compute_dtype),
        b1=p["b1"].reshape(1, E).astype(jnp.float32),
        w2=jnp.asarray(p["w2"]).T.astype(compute_dtype),
        b2=p["b2"].reshape(1, E).astype(jnp.float32),
    )


def prepare_rsa_params(p, num_heads, compute_dtype=jnp.float32):
    """Pre-split Q/K/V/O weights into per-head leading-axis blocks (no in-kernel lane slicing)."""
    E = p["gamma"].shape[0]
    assert E % num_heads == 0
    dk = E // num_heads

    def qkv_w(w):  # torch nn.Linear weight (out, in) -> (H, E_in, d_k)
        return jnp.asarray(w).T.reshape(E, num_heads, dk).transpose(1, 0, 2).astype(compute_dtype)

    def qkv_b(b):
        return jnp.asarray(b).reshape(num_heads, 1, dk).astype(jnp.float32)

    return dict(
        gamma=p["gamma"].reshape(1, E).astype(jnp.float32),
        beta=p["beta"].reshape(1, E).astype(jnp.float32),
        wq=qkv_w(p["wq"]), bq=qkv_b(p["bq"]),
        wk=qkv_w(p["wk"]), bk=qkv_b(p["bk"]),
        wv=qkv_w(p["wv"]), bv=qkv_b(p["bv"]),
        wo=jnp.asarray(p["wo"]).T.reshape(num_heads, dk, E).astype(compute_dtype),
        bo=p["bo"].reshape(1, E).astype(jnp.float32),
    )


def prepare_attn_fill(attn_mask, compute_dtype=jnp.float32):
    """Masked-fill values: NEG_INF where masked (mask==1), +BIG elsewhere."""
    m = jnp.asarray(attn_mask).astype(jnp.float32)
    return jnp.where(m > 0.5, NEG_INF, BIG_POS).astype(compute_dtype)


def _slab_tile(B0, S):
    # Batch enough slabs per grid step to amortize per-step overhead; cap the
    # static unroll so trace/compile time stays bounded.
    return min(B0, max(1, min(8, 256 // max(S, 1))))


# ----------------------------- wrappers ----------------------------------------
def set_encoder_rff(x, params, *, compute_dtype=jnp.float32, row_tile=512):
    """SetEncoder(layer_type='rFF'):  x + FF(LayerNorm(x)).  params from prepare_rff_params."""
    B0, S, E = x.shape
    R = B0 * S
    xf = x.reshape(R, E)                                   # row-wise op: flatten rows
    TR = min(_round_up(row_tile, 8), _round_up(R, 8))
    Rp = _round_up(R, TR)
    if Rp != R:
        xf = jnp.pad(xf, ((0, Rp - R), (0, 0)))
    const = lambda shape: pl.BlockSpec(shape, lambda r, _s=shape: (0,) * len(_s))
    out = pl.pallas_call(
        functools.partial(_rff_kernel, compute_dtype),
        out_shape=jax.ShapeDtypeStruct((Rp, E), x.dtype),
        grid=(Rp // TR,),
        in_specs=[
            pl.BlockSpec((TR, E), lambda r: (r, 0)),
            const((1, E)), const((1, E)),
            const((E, E)), const((1, E)),
            const((E, E)), const((1, E)),
        ],
        out_specs=pl.BlockSpec((TR, E), lambda r: (r, 0)),
        compiler_params=pltpu.CompilerParams(
            dimension_semantics=("parallel",),             # shards across v7x's 2 TCs
            vmem_limit_bytes=32 * 1024 * 1024),
    )(xf, params["gamma"], params["beta"],
      params["w1"], params["b1"], params["w2"], params["b2"])
    return out[:R].reshape(B0, S, E)


def set_encoder_rsa(x, attn_mask, params, num_heads, *,
                    compute_dtype=jnp.float32, slab_tile=None):
    """SetEncoder(layer_type='rSA'):  x + MHA(LayerNorm(x), attn_mask)."""
    B0, S, E = x.shape
    dk = E // num_heads
    H = num_heads
    approx = jnp.dtype(compute_dtype) != jnp.dtype(jnp.float32)
    NB = slab_tile if slab_tile is not None else _slab_tile(B0, S)
    B0p = _round_up(B0, NB)
    fill = prepare_attn_fill(attn_mask, compute_dtype)
    if B0p != B0:
        x = jnp.pad(x, ((0, B0p - B0), (0, 0), (0, 0)))
        fill = jnp.pad(fill, ((0, B0p - B0), (0, 0), (0, 0)), constant_values=BIG_POS)
    const = lambda shape: pl.BlockSpec(shape, lambda g, _s=shape: (0,) * len(_s))
    out = pl.pallas_call(
        functools.partial(_rsa_kernel, num_heads, compute_dtype, approx),
        out_shape=jax.ShapeDtypeStruct((B0p, S, E), x.dtype),
        grid=(B0p // NB,),
        in_specs=[
            pl.BlockSpec((NB, S, E), lambda g: (g, 0, 0)),
            pl.BlockSpec((NB, S, S), lambda g: (g, 0, 0)),
            const((1, E)), const((1, E)),
            const((H, E, dk)), const((H, 1, dk)),
            const((H, E, dk)), const((H, 1, dk)),
            const((H, E, dk)), const((H, 1, dk)),
            const((H, dk, E)), const((1, E)),
        ],
        out_specs=pl.BlockSpec((NB, S, E), lambda g: (g, 0, 0)),
        compiler_params=pltpu.CompilerParams(
            dimension_semantics=("parallel",),
            vmem_limit_bytes=32 * 1024 * 1024),
    )(x, fill, params["gamma"], params["beta"],
      params["wq"], params["bq"], params["wk"], params["bk"],
      params["wv"], params["bv"], params["wo"], params["bo"])
    return out[:B0]


def set_encoder_block(x, attn_mask, rsa_params, rff_params, num_heads, *,
                      compute_dtype=jnp.float32, slab_tile=None):
    """Fused: rSA-SetEncoder followed by rFF-SetEncoder in ONE pallas_call."""
    B0, S, E = x.shape
    dk = E // num_heads
    H = num_heads
    approx = jnp.dtype(compute_dtype) != jnp.dtype(jnp.float32)
    NB = slab_tile if slab_tile is not None else _slab_tile(B0, S)
    B0p = _round_up(B0, NB)
    fill = prepare_attn_fill(attn_mask, compute_dtype)
    if B0p != B0:
        x = jnp.pad(x, ((0, B0p - B0), (0, 0), (0, 0)))
        fill = jnp.pad(fill, ((0, B0p - B0), (0, 0), (0, 0)), constant_values=BIG_POS)
    const = lambda shape: pl.BlockSpec(shape, lambda g, _s=shape: (0,) * len(_s))
    out = pl.pallas_call(
        functools.partial(_fused_block_kernel, num_heads, compute_dtype, approx),
        out_shape=jax.ShapeDtypeStruct((B0p, S, E), x.dtype),
        grid=(B0p // NB,),
        in_specs=[
            pl.BlockSpec((NB, S, E), lambda g: (g, 0, 0)),
            pl.BlockSpec((NB, S, S), lambda g: (g, 0, 0)),
            const((1, E)), const((1, E)),
            const((H, E, dk)), const((H, 1, dk)),
            const((H, E, dk)), const((H, 1, dk)),
            const((H, E, dk)), const((H, 1, dk)),
            const((H, dk, E)), const((1, E)),
            const((1, E)), const((1, E)),
            const((E, E)), const((1, E)),
            const((E, E)), const((1, E)),
        ],
        out_specs=pl.BlockSpec((NB, S, E), lambda g: (g, 0, 0)),
        compiler_params=pltpu.CompilerParams(
            dimension_semantics=("parallel",),
            vmem_limit_bytes=32 * 1024 * 1024),
    )(x, fill,
      rsa_params["gamma"], rsa_params["beta"],
      rsa_params["wq"], rsa_params["bq"], rsa_params["wk"], rsa_params["bk"],
      rsa_params["wv"], rsa_params["bv"], rsa_params["wo"], rsa_params["bo"],
      rff_params["gamma"], rff_params["beta"],
      rff_params["w1"], rff_params["b1"], rff_params["w2"], rff_params["b2"])
    return out[:B0]


# ----------------------------- pure-JAX references -----------------------------
def _ref_ln(x, g, b):
    mean = jnp.mean(x, axis=-1, keepdims=True)
    var = jnp.mean((x - mean) ** 2, axis=-1, keepdims=True)
    return (x - mean) * jax.lax.rsqrt(var + EPS) * g + b


def ref_set_encoder_rff(x, p):
    y = _ref_ln(x, p["gamma"], p["beta"])
    h = _gelu(y @ p["w1"].T + p["b1"])
    return x + (h @ p["w2"].T + p["b2"])


def ref_set_encoder_rsa(x, mask, p, H):
    N, S, E = x.shape
    dk = E // H
    y = _ref_ln(x, p["gamma"], p["beta"])
    q = (y @ p["wq"].T + p["bq"]).reshape(N, S, H, dk).transpose(0, 2, 1, 3)
    k = (y @ p["wk"].T + p["bk"]).reshape(N, S, H, dk).transpose(0, 2, 1, 3)
    v = (y @ p["wv"].T + p["bv"]).reshape(N, S, H, dk).transpose(0, 2, 1, 3)
    logits = jnp.einsum("nhqd,nhkd->nhqk", q, k) / jnp.sqrt(jnp.float32(dk))
    logits = jnp.where(mask[:, None] == 1.0, NEG_INF, logits)
    w = jax.nn.softmax(logits, axis=-1)
    o = jnp.einsum("nhqk,nhkd->nhqd", w, v).transpose(0, 2, 1, 3).reshape(N, S, E)
    return x + (o @ p["wo"].T + p["bo"])


# ----------------------------- main --------------------------------------------
if __name__ == "__main__":
    B0, S, E, H = 2, 8, 32, 4          # (seq-like, batch-like, embed), 4 heads
    key = jax.random.PRNGKey(0)
    keys = jax.random.split(key, 16)

    x = jax.random.normal(keys[0], (B0, S, E), jnp.float32)
    attn_mask = (jax.random.uniform(keys[1], (B0, S, S)) < 0.2).astype(jnp.float32)

    def lin(kw, kb, out_dim, in_dim):
        return (0.1 * jax.random.normal(kw, (out_dim, in_dim), jnp.float32),
                0.05 * jax.random.normal(kb, (out_dim,), jnp.float32))

    # shared LayerNorm params
    gamma = 1.0 + 0.1 * jax.random.normal(keys[2], (E,), jnp.float32)
    beta = 0.1 * jax.random.normal(keys[3], (E,), jnp.float32)

    # rSA (MultiHeadAttention) params — PyTorch nn.Linear layout: W is (out, in)
    wq, bq = lin(keys[4], keys[5], E, E)
    wk, bk = lin(keys[6], keys[7], E, E)
    wv, bv = lin(keys[8], keys[9], E, E)
    wo, bo = lin(keys[10], keys[11], E, E)
    rsa_torch = dict(gamma=gamma, beta=beta, wq=wq, bq=bq, wk=wk, bk=bk,
                     wv=wv, bv=bv, wo=wo, bo=bo)

    # rFF (FeedForward) params
    w1, b1 = lin(keys[12], keys[13], E, E)
    w2, b2 = lin(keys[14], keys[15], E, E)
    rff_torch = dict(gamma=gamma, beta=beta, w1=w1, b1=b1, w2=w2, b2=b2)

    # pure-JAX references (PyTorch-layout params)
    y_rsa_ref = ref_set_encoder_rsa(x, attn_mask, rsa_torch, H)
    y_rff_ref = ref_set_encoder_rff(x, rff_torch)
    y_blk_ref = ref_set_encoder_rff(ref_set_encoder_rsa(x, attn_mask, rsa_torch, H), rff_torch)

    # ---------- f32 compute path (tight correctness; v5e-friendly) ----------
    rsa_p = prepare_rsa_params(rsa_torch, H, jnp.float32)
    rff_p = prepare_rff_params(rff_torch, jnp.float32)
    y_rsa = jax.block_until_ready(set_encoder_rsa(x, attn_mask, rsa_p, H,
                                                  compute_dtype=jnp.float32))
    y_rff = jax.block_until_ready(set_encoder_rff(x, rff_p, compute_dtype=jnp.float32))
    y_blk = jax.block_until_ready(set_encoder_block(x, attn_mask, rsa_p, rff_p, H,
                                                    compute_dtype=jnp.float32))
    assert jnp.allclose(y_rsa, y_rsa_ref, rtol=2e-4, atol=2e-4), "rSA (f32) mismatch"
    assert jnp.allclose(y_rff, y_rff_ref, rtol=2e-4, atol=2e-4), "rFF (f32) mismatch"
    assert jnp.allclose(y_blk, y_blk_ref, rtol=5e-4, atol=5e-4), "fused block (f32) mismatch"

    # ---------- bf16 matmul-input path (v6e/v7x MXU; f32 accumulation) ----------
    rsa_p16 = prepare_rsa_params(rsa_torch, H, jnp.bfloat16)
    rff_p16 = prepare_rff_params(rff_torch, jnp.bfloat16)
    y_rsa16 = jax.block_until_ready(set_encoder_rsa(x, attn_mask, rsa_p16, H,
                                                    compute_dtype=jnp.bfloat16))
    y_rff16 = jax.block_until_ready(set_encoder_rff(x, rff_p16,
                                                    compute_dtype=jnp.bfloat16))
    assert jnp.allclose(y_rsa16, y_rsa_ref, rtol=5e-2, atol=5e-2), "rSA (bf16) mismatch"
    assert jnp.allclose(y_rff16, y_rff_ref, rtol=5e-2, atol=5e-2), "rFF (bf16) mismatch"

    print("KERNEL_OK")
</pallas_src>

<mosaic_0001>
module attributes {stable_mosaic.version = 11 : i64} {
  func.func @_rsa_kernel(%arg0: i32, %arg1: memref<2x8x32xf32, #tpu.memory_space<vmem>>, %arg2: memref<2x8x8xf32, #tpu.memory_space<vmem>>, %arg3: memref<1x32xf32, #tpu.memory_space<vmem>>, %arg4: memref<1x32xf32, #tpu.memory_space<vmem>>, %arg5: memref<4x32x8xf32, #tpu.memory_space<vmem>>, %arg6: memref<4x1x8xf32, #tpu.memory_space<vmem>>, %arg7: memref<4x32x8xf32, #tpu.memory_space<vmem>>, %arg8: memref<4x1x8xf32, #tpu.memory_space<vmem>>, %arg9: memref<4x32x8xf32, #tpu.memory_space<vmem>>, %arg10: memref<4x1x8xf32, #tpu.memory_space<vmem>>, %arg11: memref<4x8x32xf32, #tpu.memory_space<vmem>>, %arg12: memref<1x32xf32, #tpu.memory_space<vmem>>, %arg13: memref<2x8x32xf32, #tpu.memory_space<vmem>>) attributes {dimension_semantics = [#tpu.dimension_semantics<parallel>], iteration_bounds = array<i64: 1>, scalar_prefetch = 0 : i64, scratch_operands = 0 : i64, tpu.core_type = #tpu.core_type<tc>, window_params = [{transform_indices = @transform_0, window_bounds = array<i64: 2, 8, 32>}, {transform_indices = @transform_1, window_bounds = array<i64: 2, 8, 8>}, {pipeline_mode = #tpu.pipeline_mode<synchronous>, transform_indices = @transform_2, window_bounds = array<i64: 1, 32>}, {pipeline_mode = #tpu.pipeline_mode<synchronous>, transform_indices = @transform_3, window_bounds = array<i64: 1, 32>}, {pipeline_mode = #tpu.pipeline_mode<synchronous>, transform_indices = @transform_4, window_bounds = array<i64: 4, 32, 8>}, {pipeline_mode = #tpu.pipeline_mode<synchronous>, transform_indices = @transform_5, window_bounds = array<i64: 4, 1, 8>}, {pipeline_mode = #tpu.pipeline_mode<synchronous>, transform_indices = @transform_6, window_bounds = array<i64: 4, 32, 8>}, {pipeline_mode = #tpu.pipeline_mode<synchronous>, transform_indices = @transform_7, window_bounds = array<i64: 4, 1, 8>}, {pipeline_mode = #tpu.pipeline_mode<synchronous>, transform_indices = @transform_8, window_bounds = array<i64: 4, 32, 8>}, {pipeline_mode = #tpu.pipeline_mode<synchronous>, transform_indices = @transform_9, window_bounds = array<i64: 4, 1, 8>}, {pipeline_mode = #tpu.pipeline_mode<synchronous>, transform_indices = @transform_10, window_bounds = array<i64: 4, 8, 32>}, {pipeline_mode = #tpu.pipeline_mode<synchronous>, transform_indices = @transform_11, window_bounds = array<i64: 1, 32>}, {transform_indices = @transform_12, window_bounds = array<i64: 2, 8, 32>}]} {
    %c0 = arith.constant 0 : index
    %c0_0 = arith.constant 0 : index
    %0 = vector.load %arg3[%c0, %c0_0] : memref<1x32xf32, #tpu.memory_space<vmem>>, vector<1x32xf32>
    %c0_1 = arith.constant 0 : index
    %c0_2 = arith.constant 0 : index
    %1 = vector.load %arg4[%c0_1, %c0_2] : memref<1x32xf32, #tpu.memory_space<vmem>>, vector<1x32xf32>
    %c0_3 = arith.constant 0 : index
    %c0_4 = arith.constant 0 : index
    %2 = vector.load %arg12[%c0_3, %c0_4] : memref<1x32xf32, #tpu.memory_space<vmem>>, vector<1x32xf32>
    %c0_5 = arith.constant 0 : index
    %c0_6 = arith.constant 0 : index
    %c0_7 = arith.constant 0 : index
    %3 = vector.load %arg5[%c0_5, %c0_6, %c0_7] : memref<4x32x8xf32, #tpu.memory_space<vmem>>, vector<4x32x8xf32>
    %c0_8 = arith.constant 0 : index
    %c0_9 = arith.constant 0 : index
    %c0_10 = arith.constant 0 : index
    %4 = vector.load %arg6[%c0_8, %c0_9, %c0_10] : memref<4x1x8xf32, #tpu.memory_space<vmem>>, vector<4x1x8xf32>
    %c0_11 = arith.constant 0 : index
    %c0_12 = arith.constant 0 : index
    %c0_13 = arith.constant 0 : index
    %5 = vector.load %arg7[%c0_11, %c0_12, %c0_13] : memref<4x32x8xf32, #tpu.memory_space<vmem>>, vector<4x32x8xf32>
    %c0_14 = arith.constant 0 : index
    %c0_15 = arith.constant 0 : index
    %c0_16 = arith.constant 0 : index
    %6 = vector.load %arg8[%c0_14, %c0_15, %c0_16] : memref<4x1x8xf32, #tpu.memory_space<vmem>>, vector<4x1x8xf32>
    %c0_17 = arith.constant 0 : index
    %c0_18 = arith.constant 0 : index
    %c0_19 = arith.constant 0 : index
    %7 = vector.load %arg9[%c0_17, %c0_18, %c0_19] : memref<4x32x8xf32, #tpu.memory_space<vmem>>, vector<4x32x8xf32>
    %c0_20 = arith.constant 0 : index
    %c0_21 = arith.constant 0 : index
    %c0_22 = arith.constant 0 : index
    %8 = vector.load %arg10[%c0_20, %c0_21, %c0_22] : memref<4x1x8xf32, #tpu.memory_space<vmem>>, vector<4x1x8xf32>
    %c0_23 = arith.constant 0 : index
    %c0_24 = arith.constant 0 : index
    %c0_25 = arith.constant 0 : index
    %9 = vector.load %arg11[%c0_23, %c0_24, %c0_25] : memref<4x8x32xf32, #tpu.memory_space<vmem>>, vector<4x8x32xf32>
    %c0_26 = arith.constant 0 : index
    %c0_27 = arith.constant 0 : index
    %c0_28 = arith.constant 0 : index
    %10 = vector.load %arg1[%c0_26, %c0_27, %c0_28] : memref<2x8x32xf32, #tpu.memory_space<vmem>>, vector<1x8x32xf32>
    %11 = vector.shape_cast %10 : vector<1x8x32xf32> to vector<8x32xf32>
    %c0_29 = arith.constant 0 : index
    %c0_30 = arith.constant 0 : index
    %c0_31 = arith.constant 0 : index
    %12 = vector.load %arg2[%c0_29, %c0_30, %c0_31] : memref<2x8x8xf32, #tpu.memory_space<vmem>>, vector<1x8x8xf32>
    %13 = vector.shape_cast %12 : vector<1x8x8xf32> to vector<8x8xf32>
    %cst = arith.constant dense<0.000000e+00> : vector<8xf32>
    %14 = vector.multi_reduction <add>, %11, %cst [1] : vector<8x32xf32> to vector<8xf32>
    %15 = vector.shape_cast %14 : vector<8xf32> to vector<8x1xf32>
    %cst_32 = arith.constant 3.200000e+01 : f32
    %16 = vector.broadcast %cst_32 : f32 to vector<8x1xf32>
    %17 = arith.divf %15, %16 : vector<8x1xf32>
    %18 = vector.broadcast %17 : vector<8x1xf32> to vector<8x32xf32>
    %19 = arith.subf %11, %18 : vector<8x32xf32>
    %20 = arith.mulf %19, %19 : vector<8x32xf32>
    %cst_33 = arith.constant dense<0.000000e+00> : vector<8xf32>
    %21 = vector.multi_reduction <add>, %20, %cst_33 [1] : vector<8x32xf32> to vector<8xf32>
    %22 = vector.shape_cast %21 : vector<8xf32> to vector<8x1xf32>
    %cst_34 = arith.constant 3.200000e+01 : f32
    %23 = vector.broadcast %cst_34 : f32 to vector<8x1xf32>
    %24 = arith.divf %22, %23 : vector<8x1xf32>
    %25 = vector.broadcast %17 : vector<8x1xf32> to vector<8x32xf32>
    %26 = arith.subf %11, %25 : vector<8x32xf32>
    %cst_35 = arith.constant 9.99999997E-7 : f32
    %27 = vector.broadcast %cst_35 : f32 to vector<8x1xf32>
    %28 = arith.addf %24, %27 : vector<8x1xf32>
    %29 = math.rsqrt %28 : vector<8x1xf32>
    %30 = vector.broadcast %29 : vector<8x1xf32> to vector<8x32xf32>
    %31 = arith.mulf %26, %30 : vector<8x32xf32>
    %32 = vector.broadcast %0 : vector<1x32xf32> to vector<8x32xf32>
    %33 = arith.mulf %31, %32 : vector<8x32xf32>
    %34 = vector.broadcast %1 : vector<1x32xf32> to vector<8x32xf32>
    %35 = arith.addf %33, %34 : vector<8x32xf32>
    %cst_36 = arith.constant 0.000000e+00 : f32
    %36 = vector.broadcast %cst_36 : f32 to vector<8x32xf32>
    %37 = vector.extract_strided_slice %3 {offsets = [0, 0, 0], sizes = [1, 32, 8], strides = [1, 1, 1]} : vector<4x32x8xf32> to vector<1x32x8xf32>
    %38 = vector.shape_cast %37 : vector<1x32x8xf32> to vector<32x8xf32>
    %cst_37 = arith.constant dense<0.000000e+00> : vector<8x8xf32>
    %39 = tpu.matmul %35, %38, %cst_37 {dimension_numbers = #tpu.dot_dimension_numbers<[1], [0], [0], [1], [0, 0, 1, 1], [], []>} : vector<8x32xf32>, vector<32x8xf32>, vector<8x8xf32> -> vector<8x8xf32>
    %40 = vector.extract_strided_slice %4 {offsets = [0, 0, 0], sizes = [1, 1, 8], strides = [1, 1, 1]} : vector<4x1x8xf32> to vector<1x1x8xf32>
    %41 = vector.shape_cast %40 : vector<1x1x8xf32> to vector<1x8xf32>
    %42 = vector.broadcast %41 : vector<1x8xf32> to vector<8x8xf32>
    %43 = arith.addf %39, %42 : vector<8x8xf32>
    %44 = vector.extract_strided_slice %5 {offsets = [0, 0, 0], sizes = [1, 32, 8], strides = [1, 1, 1]} : vector<4x32x8xf32> to vector<1x32x8xf32>
    %45 = vector.shape_cast %44 : vector<1x32x8xf32> to vector<32x8xf32>
    %cst_38 = arith.constant dense<0.000000e+00> : vector<8x8xf32>
    %46 = tpu.matmul %35, %45, %cst_38 {dimension_numbers = #tpu.dot_dimension_numbers<[1], [0], [0], [1], [0, 0, 1, 1], [], []>} : vector<8x32xf32>, vector<32x8xf32>, vector<8x8xf32> -> vector<8x8xf32>
    %47 = vector.extract_strided_slice %6 {offsets = [0, 0, 0], sizes = [1, 1, 8], strides = [1, 1, 1]} : vector<4x1x8xf32> to vector<1x1x8xf32>
    %48 = vector.shape_cast %47 : vector<1x1x8xf32> to vector<1x8xf32>
    %49 = vector.broadcast %48 : vector<1x8xf32> to vector<8x8xf32>
    %50 = arith.addf %46, %49 : vector<8x8xf32>
    %51 = vector.extract_strided_slice %7 {offsets = [0, 0, 0], sizes = [1, 32, 8], strides = [1, 1, 1]} : vector<4x32x8xf32> to vector<1x32x8xf32>
    %52 = vector.shape_cast %51 : vector<1x32x8xf32> to vector<32x8xf32>
    %cst_39 = arith.constant dense<0.000000e+00> : vector<8x8xf32>
    %53 = tpu.matmul %35, %52, %cst_39 {dimension_numbers = #tpu.dot_dimension_numbers<[1], [0], [0], [1], [0, 0, 1, 1], [], []>} : vector<8x32xf32>, vector<32x8xf32>, vector<8x8xf32> -> vector<8x8xf32>
    %54 = vector.extract_strided_slice %8 {offsets = [0, 0, 0], sizes = [1, 1, 8], strides = [1, 1, 1]} : vector<4x1x8xf32> to vector<1x1x8xf32>
    %55 = vector.shape_cast %54 : vector<1x1x8xf32> to vector<1x8xf32>
    %56 = vector.broadcast %55 : vector<1x8xf32> to vector<8x8xf32>
    %57 = arith.addf %53, %56 : vector<8x8xf32>
    %58 = tpu.transpose %50, [1, 0] : vector<8x8xf32> -> vector<8x8xf32>
    %cst_40 = arith.constant dense<0.000000e+00> : vector<8x8xf32>
    %59 = tpu.matmul %43, %58, %cst_40 {dimension_numbers = #tpu.dot_dimension_numbers<[1], [0], [0], [1], [0, 0, 1, 1], [], []>} : vector<8x8xf32>, vector<8x8xf32>, vector<8x8xf32> -> vector<8x8xf32>
    %cst_41 = arith.constant 0.353553385 : f32
    %60 = vector.broadcast %cst_41 : f32 to vector<8x8xf32>
    %61 = arith.mulf %59, %60 : vector<8x8xf32>
    %62 = arith.minimumf %61, %13 : vector<8x8xf32>
    %cst_42 = arith.constant dense<0xFF800000> : vector<8xf32>
    %63 = vector.multi_reduction <maximumf>, %62, %cst_42 [1] : vector<8x8xf32> to vector<8xf32>
    %64 = vector.shape_cast %63 : vector<8xf32> to vector<8x1xf32>
    %65 = vector.broadcast %64 : vector<8x1xf32> to vector<8x8xf32>
    %66 = arith.subf %62, %65 : vector<8x8xf32>
    %67 = math.exp %66 : vector<8x8xf32>
    %cst_43 = arith.constant dense<0.000000e+00> : vector<8xf32>
    %68 = vector.multi_reduction <add>, %67, %cst_43 [1] : vector<8x8xf32> to vector<8xf32>
    %69 = vector.shape_cast %68 : vector<8xf32> to vector<8x1xf32>
    %70 = tpu.reciprocal %69 : vector<8x1xf32> -> vector<8x1xf32>
    %71 = vector.broadcast %70 : vector<8x1xf32> to vector<8x8xf32>
    %72 = arith.mulf %67, %71 : vector<8x8xf32>
    %cst_44 = arith.constant dense<0.000000e+00> : vector<8x8xf32>
    %73 = tpu.matmul %72, %57, %cst_44 {dimension_numbers = #tpu.dot_dimension_numbers<[1], [0], [0], [1], [0, 0, 1, 1], [], []>} : vector<8x8xf32>, vector<8x8xf32>, vector<8x8xf32> -> vector<8x8xf32>
    %74 = vector.extract_strided_slice %9 {offsets = [0, 0, 0], sizes = [1, 8, 32], strides = [1, 1, 1]} : vector<4x8x32xf32> to vector<1x8x32xf32>
    %75 = vector.shape_cast %74 : vector<1x8x32xf32> to vector<8x32xf32>
    %cst_45 = arith.constant dense<0.000000e+00> : vector<8x32xf32>
    %76 = tpu.matmul %73, %75, %cst_45 {dimension_numbers = #tpu.dot_dimension_numbers<[1], [0], [0], [1], [0, 0, 1, 1], [], []>} : vector<8x8xf32>, vector<8x32xf32>, vector<8x32xf32> -> vector<8x32xf32>
    %77 = arith.addf %36, %76 : vector<8x32xf32>
    %78 = vector.extract_strided_slice %3 {offsets = [1, 0, 0], sizes = [1, 32, 8], strides = [1, 1, 1]} : vector<4x32x8xf32> to vector<1x32x8xf32>
    %79 = vector.shape_cast %78 : vector<1x32x8xf32> to vector<32x8xf32>
    %cst_46 = arith.constant dense<0.000000e+00> : vector<8x8xf32>
    %80 = tpu.matmul %35, %79, %cst_46 {dimension_numbers = #tpu.dot_dimension_numbers<[1], [0], [0], [1], [0, 0, 1, 1], [], []>} : vector<8x32xf32>, vector<32x8xf32>, vector<8x8xf32> -> vector<8x8xf32>
    %81 = vector.extract_strided_slice %4 {offsets = [1, 0, 0], sizes = [1, 1, 8], strides = [1, 1, 1]} : vector<4x1x8xf32> to vector<1x1x8xf32>
    %82 = vector.shape_cast %81 : vector<1x1x8xf32> to vector<1x8xf32>
    %83 = vector.broadcast %82 : vector<1x8xf32> to vector<8x8xf32>
    %84 = arith.addf %80, %83 : vector<8x8xf32>
    %85 = vector.extract_strided_slice %5 {offsets = [1, 0, 0], sizes = [1, 32, 8], strides = [1, 1, 1]} : vector<4x32x8xf32> to vector<1x32x8xf32>
    %86 = vector.shape_cast %85 : vector<1x32x8xf32> to vector<32x8xf32>
    %cst_47 = arith.constant dense<0.000000e+00> : vector<8x8xf32>
    %87 = tpu.matmul %35, %86, %cst_47 {dimension_numbers = #tpu.dot_dimension_numbers<[1], [0], [0], [1], [0, 0, 1, 1], [], []>} : vector<8x32xf32>, vector<32x8xf32>, vector<8x8xf32> -> vector<8x8xf32>
    %88 = vector.extract_strided_slice %6 {offsets = [1, 0, 0], sizes = [1, 1, 8], strides = [1, 1, 1]} : vector<4x1x8xf32> to vector<1x1x8xf32>
    %89 = vector.shape_cast %88 : vector<1x1x8xf32> to vector<1x8xf32>
    %90 = vector.broadcast %89 : vector<1x8xf32> to vector<8x8xf32>
    %91 = arith.addf %87, %90 : vector<8x8xf32>
    %92 = vector.extract_strided_slice %7 {offsets = [1, 0, 0], sizes = [1, 32, 8], strides = [1, 1, 1]} : vector<4x32x8xf32> to vector<1x32x8xf32>
    %93 = vector.shape_cast %92 : vector<1x32x8xf32> to vector<32x8xf32>
    %cst_48 = arith.constant dense<0.000000e+00> : vector<8x8xf32>
    %94 = tpu.matmul %35, %93, %cst_48 {dimension_numbers = #tpu.dot_dimension_numbers<[1], [0], [0], [1], [0, 0, 1, 1], [], []>} : vector<8x32xf32>, vector<32x8xf32>, vector<8x8xf32> -> vector<8x8xf32>
    %95 = vector.extract_strided_slice %8 {offsets = [1, 0, 0], sizes = [1, 1, 8], strides = [1, 1, 1]} : vector<4x1x8xf32> to vector<1x1x8xf32>
    %96 = vector.shape_cast %95 : vector<1x1x8xf32> to vector<1x8xf32>
    %97 = vector.broadcast %96 : vector<1x8xf32> to vector<8x8xf32>
    %98 = arith.addf %94, %97 : vector<8x8xf32>
    %99 = tpu.transpose %91, [1, 0] : vector<8x8xf32> -> vector<8x8xf32>
    %cst_49 = arith.constant dense<0.000000e+00> : vector<8x8xf32>
    %100 = tpu.matmul %84, %99, %cst_49 {dimension_numbers = #tpu.dot_dimension_numbers<[1], [0], [0], [1], [0, 0, 1, 1], [], []>} : vector<8x8xf32>, vector<8x8xf32>, vector<8x8xf32> -> vector<8x8xf32>
    %cst_50 = arith.constant 0.353553385 : f32
    %101 = vector.broadcast %cst_50 : f32 to vector<8x8xf32>
    %102 = arith.mulf %100, %101 : vector<8x8xf32>
    %103 = arith.minimumf %102, %13 : vector<8x8xf32>
    %cst_51 = arith.constant dense<0xFF800000> : vector<8xf32>
    %104 = vector.multi_reduction <maximumf>, %103, %cst_51 [1] : vector<8x8xf32> to vector<8xf32>
    %105 = vector.shape_cast %104 : vector<8xf32> to vector<8x1xf32>
    %106 = vector.broadcast %105 : vector<8x1xf32> to vector<8x8xf32>
    %107 = arith.subf %103, %106 : vector<8x8xf32>
    %108 = math.exp %107 : vector<8x8xf32>
    %cst_52 = arith.constant dense<0.000000e+00> : vector<8xf32>
    %109 = vector.multi_reduction <add>, %108, %cst_52 [1] : vector<8x8xf32> to vector<8xf32>
    %110 = vector.shape_cast %109 : vector<8xf32> to vector<8x1xf32>
    %111 = tpu.reciprocal %110 : vector<8x1xf32> -> vector<8x1xf32>
    %112 = vector.broadcast %111 : vector<8x1xf32> to vector<8x8xf32>
    %113 = arith.mulf %108, %112 : vector<8x8xf32>
    %cst_53 = arith.constant dense<0.000000e+00> : vector<8x8xf32>
    %114 = tpu.matmul %113, %98, %cst_53 {dimension_numbers = #tpu.dot_dimension_numbers<[1], [0], [0], [1], [0, 0, 1, 1], [], []>} : vector<8x8xf32>, vector<8x8xf32>, vector<8x8xf32> -> vector<8x8xf32>
    %115 = vector.extract_strided_slice %9 {offsets = [1, 0, 0], sizes = [1, 8, 32], strides = [1, 1, 1]} : vector<4x8x32xf32> to vector<1x8x32xf32>
    %116 = vector.shape_cast %115 : vector<1x8x32xf32> to vector<8x32xf32>
    %cst_54 = arith.constant dense<0.000000e+00> : vector<8x32xf32>
    %117 = tpu.matmul %114, %116, %cst_54 {dimension_numbers = #tpu.dot_dimension_numbers<[1], [0], [0], [1], [0, 0, 1, 1], [], []>} : vector<8x8xf32>, vector<8x32xf32>, vector<8x32xf32> -> vector<8x32xf32>
    %118 = arith.addf %77, %117 : vector<8x32xf32>
    %119 = vector.extract_strided_slice %3 {offsets = [2, 0, 0], sizes = [1, 32, 8], strides = [1, 1, 1]} : vector<4x32x8xf32> to vector<1x32x8xf32>
    %120 = vector.shape_cast %119 : vector<1x32x8xf32> to vector<32x8xf32>
    %cst_55 = arith.constant dense<0.000000e+00> : vector<8x8xf32>
    %121 = tpu.matmul %35, %120, %cst_55 {dimension_numbers = #tpu.dot_dimension_numbers<[1], [0], [0], [1], [0, 0, 1, 1], [], []>} : vector<8x32xf32>, vector<32x8xf32>, vector<8x8xf32> -> vector<8x8xf32>
    %122 = vector.extract_strided_slice %4 {offsets = [2, 0, 0], sizes = [1, 1, 8], strides = [1, 1, 1]} : vector<4x1x8xf32> to vector<1x1x8xf32>
    %123 = vector.shape_cast %122 : vector<1x1x8xf32> to vector<1x8xf32>
    %124 = vector.broadcast %123 : vector<1x8xf32> to vector<8x8xf32>
    %125 = arith.addf %121, %124 : vector<8x8xf32>
    %126 = vector.extract_strided_slice %5 {offsets = [2, 0, 0], sizes = [1, 32, 8], strides = [1, 1, 1]} : vector<4x32x8xf32> to vector<1x32x8xf32>
    %127 = vector.shape_cast %126 : vector<1x32x8xf32> to vector<32x8xf32>
    %cst_56 = arith.constant dense<0.000000e+00> : vector<8x8xf32>
    %128 = tpu.matmul %35, %127, %cst_56 {dimension_numbers = #tpu.dot_dimension_numbers<[1], [0], [0], [1], [0, 0, 1, 1], [], []>} : vector<8x32xf32>, vector<32x8xf32>, vector<8x8xf32> -> vector<8x8xf32>
    %129 = vector.extract_strided_slice %6 {offsets = [2, 0, 0], sizes = [1, 1, 8], strides = [1, 1, 1]} : vector<4x1x8xf32> to vector<1x1x8xf32>
    %130 = vector.shape_cast %129 : vector<1x1x8xf32> to vector<1x8xf32>
    %131 = vector.broadcast %130 : vector<1x8xf32> to vector<8x8xf32>
    %132 = arith.addf %128, %131 : vector<8x8xf32>
    %133 = vector.extract_strided_slice %7 {offsets = [2, 0, 0], sizes = [1, 32, 8], strides = [1, 1, 1]} : vector<4x32x8xf32> to vector<1x32x8xf32>
    %134 = vector.shape_cast %133 : vector<1x32x8xf32> to vector<32x8xf32>
    %cst_57 = arith.constant dense<0.000000e+00> : vector<8x8xf32>
    %135 = tpu.matmul %35, %134, %cst_57 {dimension_numbers = #tpu.dot_dimension_numbers<[1], [0], [0], [1], [0, 0, 1, 1], [], []>} : vector<8x32xf32>, vector<32x8xf32>, vector<8x8xf32> -> vector<8x8xf32>
    %136 = vector.extract_strided_slice %8 {offsets = [2, 0, 0], sizes = [1, 1, 8], strides = [1, 1, 1]} : vector<4x1x8xf32> to vector<1x1x8xf32>
    %137 = vector.shape_cast %136 : vector<1x1x8xf32> to vector<1x8xf32>
    %138 = vector.broadcast %137 : vector<1x8xf32> to vector<8x8xf32>
    %139 = arith.addf %135, %138 : vector<8x8xf32>
    %140 = tpu.transpose %132, [1, 0] : vector<8x8xf32> -> vector<8x8xf32>
    %cst_58 = arith.constant dense<0.000000e+00> : vector<8x8xf32>
    %141 = tpu.matmul %125, %140, %cst_58 {dimension_numbers = #tpu.dot_dimension_numbers<[1], [0], [0], [1], [0, 0, 1, 1], [], []>} : vector<8x8xf32>, vector<8x8xf32>, vector<8x8xf32> -> vector<8x8xf32>
    %cst_59 = arith.constant 0.353553385 : f32
    %142 = vector.broadcast %cst_59 : f32 to vector<8x8xf32>
    %143 = arith.mulf %141, %142 : vector<8x8xf32>
    %144 = arith.minimumf %143, %13 : vector<8x8xf32>
    %cst_60 = arith.constant dense<0xFF800000> : vector<8xf32>
    %145 = vector.multi_reduction <maximumf>, %144, %cst_60 [1] : vector<8x8xf32> to vector<8xf32>
    %146 = vector.shape_cast %145 : vector<8xf32> to vector<8x1xf32>
    %147 = vector.broadcast %146 : vector<8x1xf32> to vector<8x8xf32>
    %148 = arith.subf %144, %147 : vector<8x8xf32>
    %149 = math.exp %148 : vector<8x8xf32>
    %cst_61 = arith.constant dense<0.000000e+00> : vector<8xf32>
    %150 = vector.multi_reduction <add>, %149, %cst_61 [1] : vector<8x8xf32> to vector<8xf32>
    %151 = vector.shape_cast %150 : vector<8xf32> to vector<8x1xf32>
    %152 = tpu.reciprocal %151 : vector<8x1xf32> -> vector<8x1xf32>
    %153 = vector.broadcast %152 : vector<8x1xf32> to vector<8x8xf32>
    %154 = arith.mulf %149, %153 : vector<8x8xf32>
    %cst_62 = arith.constant dense<0.000000e+00> : vector<8x8xf32>
    %155 = tpu.matmul %154, %139, %cst_62 {dimension_numbers = #tpu.dot_dimension_numbers<[1], [0], [0], [1], [0, 0, 1, 1], [], []>} : vector<8x8xf32>, vector<8x8xf32>, vector<8x8xf32> -> vector<8x8xf32>
    %156 = vector.extract_strided_slice %9 {offsets = [2, 0, 0], sizes = [1, 8, 32], strides = [1, 1, 1]} : vector<4x8x32xf32> to vector<1x8x32xf32>
    %157 = vector.shape_cast %156 : vector<1x8x32xf32> to vector<8x32xf32>
    %cst_63 = arith.constant dense<0.000000e+00> : vector<8x32xf32>
    %158 = tpu.matmul %155, %157, %cst_63 {dimension_numbers = #tpu.dot_dimension_numbers<[1], [0], [0], [1], [0, 0, 1, 1], [], []>} : vector<8x8xf32>, vector<8x32xf32>, vector<8x32xf32> -> vector<8x32xf32>
    %159 = arith.addf %118, %158 : vector<8x32xf32>
    %160 = vector.extract_strided_slice %3 {offsets = [3, 0, 0], sizes = [1, 32, 8], strides = [1, 1, 1]} : vector<4x32x8xf32> to vector<1x32x8xf32>
    %161 = vector.shape_cast %160 : vector<1x32x8xf32> to vector<32x8xf32>
    %cst_64 = arith.constant dense<0.000000e+00> : vector<8x8xf32>
    %162 = tpu.matmul %35, %161, %cst_64 {dimension_numbers = #tpu.dot_dimension_numbers<[1], [0], [0], [1], [0, 0, 1, 1], [], []>} : vector<8x32xf32>, vector<32x8xf32>, vector<8x8xf32> -> vector<8x8xf32>
    %163 = vector.extract_strided_slice %4 {offsets = [3, 0, 0], sizes = [1, 1, 8], strides = [1, 1, 1]} : vector<4x1x8xf32> to vector<1x1x8xf32>
    %164 = vector.shape_cast %163 : vector<1x1x8xf32> to vector<1x8xf32>
    %165 = vector.broadcast %164 : vector<1x8xf32> to vector<8x8xf32>
    %166 = arith.addf %162, %165 : vector<8x8xf32>
    %167 = vector.extract_strided_slice %5 {offsets = [3, 0, 0], sizes = [1, 32, 8], strides = [1, 1, 1]} : vector<4x32x8xf32> to vector<1x32x8xf32>
    %168 = vector.shape_cast %167 : vector<1x32x8xf32> to vector<32x8xf32>
    %cst_65 = arith.constant dense<0.000000e+00> : vector<8x8xf32>
    %169 = tpu.matmul %35, %168, %cst_65 {dimension_numbers = #tpu.dot_dimension_numbers<[1], [0], [0], [1], [0, 0, 1, 1], [], []>} : vector<8x32xf32>, vector<32x8xf32>, vector<8x8xf32> -> vector<8x8xf32>
    %170 = vector.extract_strided_slice %6 {offsets = [3, 0, 0], sizes = [1, 1, 8], strides = [1, 1, 1]} : vector<4x1x8xf32> to vector<1x1x8xf32>
    %171 = vector.shape_cast %170 : vector<1x1x8xf32> to vector<1x8xf32>
    %172 = vector.broadcast %171 : vector<1x8xf32> to vector<8x8xf32>
    %173 = arith.addf %169, %172 : vector<8x8xf32>
    %174 = vector.extract_strided_slice %7 {offsets = [3, 0, 0], sizes = [1, 32, 8], strides = [1, 1, 1]} : vector<4x32x8xf32> to vector<1x32x8xf32>
    %175 = vector.shape_cast %174 : vector<1x32x8xf32> to vector<32x8xf32>
    %cst_66 = arith.constant dense<0.000000e+00> : vector<8x8xf32>
    %176 = tpu.matmul %35, %175, %cst_66 {dimension_numbers = #tpu.dot_dimension_numbers<[1], [0], [0], [1], [0, 0, 1, 1], [], []>} : vector<8x32xf32>, vector<32x8xf32>, vector<8x8xf32> -> vector<8x8xf32>
    %177 = vector.extract_strided_slice %8 {offsets = [3, 0, 0], sizes = [1, 1, 8], strides = [1, 1, 1]} : vector<4x1x8xf32> to vector<1x1x8xf32>
    %178 = vector.shape_cast %177 : vector<1x1x8xf32> to vector<1x8xf32>
    %179 = vector.broadcast %178 : vector<1x8xf32> to vector<8x8xf32>
    %180 = arith.addf %176, %179 : vector<8x8xf32>
    %181 = tpu.transpose %173, [1, 0] : vector<8x8xf32> -> vector<8x8xf32>
    %cst_67 = arith.constant dense<0.000000e+00> : vector<8x8xf32>
    %182 = tpu.matmul %166, %181, %cst_67 {dimension_numbers = #tpu.dot_dimension_numbers<[1], [0], [0], [1], [0, 0, 1, 1], [], []>} : vector<8x8xf32>, vector<8x8xf32>, vector<8x8xf32> -> vector<8x8xf32>
    %cst_68 = arith.constant 0.353553385 : f32
    %183 = vector.broadcast %cst_68 : f32 to vector<8x8xf32>
    %184 = arith.mulf %182, %183 : vector<8x8xf32>
    %185 = arith.minimumf %184, %13 : vector<8x8xf32>
    %cst_69 = arith.constant dense<0xFF800000> : vector<8xf32>
    %186 = vector.multi_reduction <maximumf>, %185, %cst_69 [1] : vector<8x8xf32> to vector<8xf32>
    %187 = vector.shape_cast %186 : vector<8xf32> to vector<8x1xf32>
    %188 = vector.broadcast %187 : vector<8x1xf32> to vector<8x8xf32>
    %189 = arith.subf %185, %188 : vector<8x8xf32>
    %190 = math.exp %189 : vector<8x8xf32>
    %cst_70 = arith.constant dense<0.000000e+00> : vector<8xf32>
    %191 = vector.multi_reduction <add>, %190, %cst_70 [1] : vector<8x8xf32> to vector<8xf32>
    %192 = vector.shape_cast %191 : vector<8xf32> to vector<8x1xf32>
    %193 = tpu.reciprocal %192 : vector<8x1xf32> -> vector<8x1xf32>
    %194 = vector.broadcast %193 : vector<8x1xf32> to vector<8x8xf32>
    %195 = arith.mulf %190, %194 : vector<8x8xf32>
    %cst_71 = arith.constant dense<0.000000e+00> : vector<8x8xf32>
    %196 = tpu.matmul %195, %180, %cst_71 {dimension_numbers = #tpu.dot_dimension_numbers<[1], [0], [0], [1], [0, 0, 1, 1], [], []>} : vector<8x8xf32>, vector<8x8xf32>, vector<8x8xf32> -> vector<8x8xf32>
    %197 = vector.extract_strided_slice %9 {offsets = [3, 0, 0], sizes = [1, 8, 32], strides = [1, 1, 1]} : vector<4x8x32xf32> to vector<1x8x32xf32>
    %198 = vector.shape_cast %197 : vector<1x8x32xf32> to vector<8x32xf32>
    %cst_72 = arith.constant dense<0.000000e+00> : vector<8x32xf32>
    %199 = tpu.matmul %196, %198, %cst_72 {dimension_numbers = #tpu.dot_dimension_numbers<[1], [0], [0], [1], [0, 0, 1, 1], [], []>} : vector<8x8xf32>, vector<8x32xf32>, vector<8x32xf32> -> vector<8x32xf32>
    %200 = arith.addf %159, %199 : vector<8x32xf32>
    %201 = vector.broadcast %2 : vector<1x32xf32> to vector<8x32xf32>
    %202 = arith.addf %200, %201 : vector<8x32xf32>
    %203 = arith.addf %11, %202 : vector<8x32xf32>
    %c0_73 = arith.constant 0 : index
    %c0_74 = arith.constant 0 : index
    %c0_75 = arith.constant 0 : index
    %204 = vector.load %arg13[%c0_73, %c0_74, %c0_75] : memref<2x8x32xf32, #tpu.memory_space<vmem>>, vector<1x8x32xf32>
    %205 = vector.shape_cast %204 : vector<1x8x32xf32> to vector<8x32xf32>
    %206 = vector.shape_cast %203 : vector<8x32xf32> to vector<1x8x32xf32>
    tpu.vector_store %arg13[%c0_73, %c0_74, %c0_75], %206 {strides = array<i32>} : memref<2x8x32xf32, #tpu.memory_space<vmem>>, vector<1x8x32xf32>,
    %c1 = arith.constant 1 : index
    %c0_76 = arith.constant 0 : index
    %c0_77 = arith.constant 0 : index
    %207 = vector.load %arg1[%c1, %c0_76, %c0_77] : memref<2x8x32xf32, #tpu.memory_space<vmem>>, vector<1x8x32xf32>
    %208 = vector.shape_cast %207 : vector<1x8x32xf32> to vector<8x32xf32>
    %c1_78 = arith.constant 1 : index
    %c0_79 = arith.constant 0 : index
    %c0_80 = arith.constant 0 : index
    %209 = vector.load %arg2[%c1_78, %c0_79, %c0_80] : memref<2x8x8xf32, #tpu.memory_space<vmem>>, vector<1x8x8xf32>
    %210 = vector.shape_cast %209 : vector<1x8x8xf32> to vector<8x8xf32>
    %cst_81 = arith.constant dense<0.000000e+00> : vector<8xf32>
    %211 = vector.multi_reduction <add>, %208, %cst_81 [1] : vector<8x32xf32> to vector<8xf32>
    %212 = vector.shape_cast %211 : vector<8xf32> to vector<8x1xf32>
    %cst_82 = arith.constant 3.200000e+01 : f32
    %213 = vector.broadcast %cst_82 : f32 to vector<8x1xf32>
    %214 = arith.divf %212, %213 : vector<8x1xf32>
    %215 = vector.broadcast %214 : vector<8x1xf32> to vector<8x32xf32>
    %216 = arith.subf %208, %215 : vector<8x32xf32>
    %217 = arith.mulf %216, %216 : vector<8x32xf32>
    %cst_83 = arith.constant dense<0.000000e+00> : vector<8xf32>
    %218 = vector.multi_reduction <add>, %217, %cst_83 [1] : vector<8x32xf32> to vector<8xf32>
    %219 = vector.shape_cast %218 : vector<8xf32> to vector<8x1xf32>
    %cst_84 = arith.constant 3.200000e+01 : f32
    %220 = vector.broadcast %cst_84 : f32 to vector<8x1xf32>
    %221 = arith.divf %219, %220 : vector<8x1xf32>
    %222 = vector.broadcast %214 : vector<8x1xf32> to vector<8x32xf32>
    %223 = arith.subf %208, %222 : vector<8x32xf32>
    %cst_85 = arith.constant 9.99999997E-7 : f32
    %224 = vector.broadcast %cst_85 : f32 to vector<8x1xf32>
    %225 = arith.addf %221, %224 : vector<8x1xf32>
    %226 = math.rsqrt %225 : vector<8x1xf32>
    %227 = vector.broadcast %226 : vector<8x1xf32> to vector<8x32xf32>
    %228 = arith.mulf %223, %227 : vector<8x32xf32>
    %229 = vector.broadcast %0 : vector<1x32xf32> to vector<8x32xf32>
    %230 = arith.mulf %228, %229 : vector<8x32xf32>
    %231 = vector.broadcast %1 : vector<1x32xf32> to vector<8x32xf32>
    %232 = arith.addf %230, %231 : vector<8x32xf32>
    %cst_86 = arith.constant 0.000000e+00 : f32
    %233 = vector.broadcast %cst_86 : f32 to vector<8x32xf32>
    %234 = vector.extract_strided_slice %3 {offsets = [0, 0, 0], sizes = [1, 32, 8], strides = [1, 1, 1]} : vector<4x32x8xf32> to vector<1x32x8xf32>
    %235 = vector.shape_cast %234 : vector<1x32x8xf32> to vector<32x8xf32>
    %cst_87 = arith.constant dense<0.000000e+00> : vector<8x8xf32>
    %236 = tpu.matmul %232, %235, %cst_87 {dimension_numbers = #tpu.dot_dimension_numbers<[1], [0], [0], [1], [0, 0, 1, 1], [], []>} : vector<8x32xf32>, vector<32x8xf32>, vector<8x8xf32> -> vector<8x8xf32>
    %237 = vector.extract_strided_slice %4 {offsets = [0, 0, 0], sizes = [1, 1, 8], strides = [1, 1, 1]} : vector<4x1x8xf32> to vector<1x1x8xf32>
    %238 = vector.shape_cast %237 : vector<1x1x8xf32> to vector<1x8xf32>
    %239 = vector.broadcast %238 : vector<1x8xf32> to vector<8x8xf32>
    %240 = arith.addf %236, %239 : vector<8x8xf32>
    %241 = vector.extract_strided_slice %5 {offsets = [0, 0, 0], sizes = [1, 32, 8], strides = [1, 1, 1]} : vector<4x32x8xf32> to vector<1x32x8xf32>
    %242 = vector.shape_cast %241 : vector<1x32x8xf32> to vector<32x8xf32>
    %cst_88 = arith.constant dense<0.000000e+00> : vector<8x8xf32>
    %243 = tpu.matmul %232, %242, %cst_88 {dimension_numbers = #tpu.dot_dimension_numbers<[1], [0], [0], [1], [0, 0, 1, 1], [], []>} : vector<8x32xf32>, vector<32x8xf32>, vector<8x8xf32> -> vector<8x8xf32>
    %244 = vector.extract_strided_slice %6 {offsets = [0, 0, 0], sizes = [1, 1, 8], strides = [1, 1, 1]} : vector<4x1x8xf32> to vector<1x1x8xf32>
    %245 = vector.shape_cast %244 : vector<1x1x8xf32> to vector<1x8xf32>
    %246 = vector.broadcast %245 : vector<1x8xf32> to vector<8x8xf32>
    %247 = arith.addf %243, %246 : vector<8x8xf32>
    %248 = vector.extract_strided_slice %7 {offsets = [0, 0, 0], sizes = [1, 32, 8], strides = [1, 1, 1]} : vector<4x32x8xf32> to vector<1x32x8xf32>
    %249 = vector.shape_cast %248 : vector<1x32x8xf32> to vector<32x8xf32>
    %cst_89 = arith.constant dense<0.000000e+00> : vector<8x8xf32>
    %250 = tpu.matmul %232, %249, %cst_89 {dimension_numbers = #tpu.dot_dimension_numbers<[1], [0], [0], [1], [0, 0, 1, 1], [], []>} : vector<8x32xf32>, vector<32x8xf32>, vector<8x8xf32> -> vector<8x8xf32>
    %251 = vector.extract_strided_slice %8 {offsets = [0, 0, 0], sizes = [1, 1, 8], strides = [1, 1, 1]} : vector<4x1x8xf32> to vector<1x1x8xf32>
    %252 = vector.shape_cast %251 : vector<1x1x8xf32> to vector<1x8xf32>
    %253 = vector.broadcast %252 : vector<1x8xf32> to vector<8x8xf32>
    %254 = arith.addf %250, %253 : vector<8x8xf32>
    %255 = tpu.transpose %247, [1, 0] : vector<8x8xf32> -> vector<8x8xf32>
    %cst_90 = arith.constant dense<0.000000e+00> : vector<8x8xf32>
    %256 = tpu.matmul %240, %255, %cst_90 {dimension_numbers = #tpu.dot_dimension_numbers<[1], [0], [0], [1], [0, 0, 1, 1], [], []>} : vector<8x8xf32>, vector<8x8xf32>, vector<8x8xf32> -> vector<8x8xf32>
    %cst_91 = arith.constant 0.353553385 : f32
    %257 = vector.broadcast %cst_91 : f32 to vector<8x8xf32>
    %258 = arith.mulf %256, %257 : vector<8x8xf32>
    %259 = arith.minimumf %258, %210 : vector<8x8xf32>
    %cst_92 = arith.constant dense<0xFF800000> : vector<8xf32>
    %260 = vector.multi_reduction <maximumf>, %259, %cst_92 [1] : vector<8x8xf32> to vector<8xf32>
    %261 = vector.shape_cast %260 : vector<8xf32> to vector<8x1xf32>
    %262 = vector.broadcast %261 : vector<8x1xf32> to vector<8x8xf32>
    %263 = arith.subf %259, %262 : vector<8x8xf32>
    %264 = math.exp %263 : vector<8x8xf32>
    %cst_93 = arith.constant dense<0.000000e+00> : vector<8xf32>
    %265 = vector.multi_reduction <add>, %264, %cst_93 [1] : vector<8x8xf32> to vector<8xf32>
    %266 = vector.shape_cast %265 : vector<8xf32> to vector<8x1xf32>
    %267 = tpu.reciprocal %266 : vector<8x1xf32> -> vector<8x1xf32>
    %268 = vector.broadcast %267 : vector<8x1xf32> to vector<8x8xf32>
    %269 = arith.mulf %264, %268 : vector<8x8xf32>
    %cst_94 = arith.constant dense<0.000000e+00> : vector<8x8xf32>
    %270 = tpu.matmul %269, %254, %cst_94 {dimension_numbers = #tpu.dot_dimension_numbers<[1], [0], [0], [1], [0, 0, 1, 1], [], []>} : vector<8x8xf32>, vector<8x8xf32>, vector<8x8xf32> -> vector<8x8xf32>
    %271 = vector.extract_strided_slice %9 {offsets = [0, 0, 0], sizes = [1, 8, 32], strides = [1, 1, 1]} : vector<4x8x32xf32> to vector<1x8x32xf32>
    %272 = vector.shape_cast %271 : vector<1x8x32xf32> to vector<8x32xf32>
    %cst_95 = arith.constant dense<0.000000e+00> : vector<8x32xf32>
    %273 = tpu.matmul %270, %272, %cst_95 {dimension_numbers = #tpu.dot_dimension_numbers<[1], [0], [0], [1], [0, 0, 1, 1], [], []>} : vector<8x8xf32>, vector<8x32xf32>, vector<8x32xf32> -> vector<8x32xf32>
    %274 = arith.addf %233, %273 : vector<8x32xf32>
    %275 = vector.extract_strided_slice %3 {offsets = [1, 0, 0], sizes = [1, 32, 8], strides = [1, 1, 1]} : vector<4x32x8xf32> to vector<1x32x8xf32>
    %276 = vector.shape_cast %275 : vector<1x32x8xf32> to vector<32x8xf32>
    %cst_96 = arith.constant dense<0.000000e+00> : vector<8x8xf32>
    %277 = tpu.matmul %232, %276, %cst_96 {dimension_numbers = #tpu.dot_dimension_numbers<[1], [0], [0], [1], [0, 0, 1, 1], [], []>} : vector<8x32xf32>, vector<32x8xf32>, vector<8x8xf32> -> vector<8x8xf32>
    %278 = vector.extract_strided_slice %4 {offsets = [1, 0, 0], sizes = [1, 1, 8], strides = [1, 1, 1]} : vector<4x1x8xf32> to vector<1x1x8xf32>
    %279 = vector.shape_cast %278 : vector<1x1x8xf32> to vector<1x8xf32>
    %280 = vector.broadcast %279 : vector<1x8xf32> to vector<8x8xf32>
    %281 = arith.addf %277, %280 : vector<8x8xf32>
    %282 = vector.extract_strided_slice %5 {offsets = [1, 0, 0], sizes = [1, 32, 8], strides = [1, 1, 1]} : vector<4x32x8xf32> to vector<1x32x8xf32>
    %283 = vector.shape_cast %282 : vector<1x32x8xf32> to vector<32x8xf32>
    %cst_97 = arith.constant dense<0.000000e+00> : vector<8x8xf32>
    %284 = tpu.matmul %232, %283, %cst_97 {dimension_numbers = #tpu.dot_dimension_numbers<[1], [0], [0], [1], [0, 0, 1, 1], [], []>} : vector<8x32xf32>, vector<32x8xf32>, vector<8x8xf32> -> vector<8x8xf32>
    %285 = vector.extract_strided_slice %6 {offsets = [1, 0, 0], sizes = [1, 1, 8], strides = [1, 1, 1]} : vector<4x1x8xf32> to vector<1x1x8xf32>
    %286 = vector.shape_cast %285 : vector<1x1x8xf32> to vector<1x8xf32>
    %287 = vector.broadcast %286 : vector<1x8xf32> to vector<8x8xf32>
    %288 = arith.addf %284, %287 : vector<8x8xf32>
    %289 = vector.extract_strided_slice %7 {offsets = [1, 0, 0], sizes = [1, 32, 8], strides = [1, 1, 1]} : vector<4x32x8xf32> to vector<1x32x8xf32>
    %290 = vector.shape_cast %289 : vector<1x32x8xf32> to vector<32x8xf32>
    %cst_98 = arith.constant dense<0.000000e+00> : vector<8x8xf32>
    %291 = tpu.matmul %232, %290, %cst_98 {dimension_numbers = #tpu.dot_dimension_numbers<[1], [0], [0], [1], [0, 0, 1, 1], [], []>} : vector<8x32xf32>, vector<32x8xf32>, vector<8x8xf32> -> vector<8x8xf32>
    %292 = vector.extract_strided_slice %8 {offsets = [1, 0, 0], sizes = [1, 1, 8], strides = [1, 1, 1]} : vector<4x1x8xf32> to vector<1x1x8xf32>
    %293 = vector.shape_cast %292 : vector<1x1x8xf32> to vector<1x8xf32>
    %294 = vector.broadcast %293 : vector<1x8xf32> to vector<8x8xf32>
    %295 = arith.addf %291, %294 : vector<8x8xf32>
    %296 = tpu.transpose %288, [1, 0] : vector<8x8xf32> -> vector<8x8xf32>
    %cst_99 = arith.constant dense<0.000000e+00> : vector<8x8xf32>
    %297 = tpu.matmul %281, %296, %cst_99 {dimension_numbers = #tpu.dot_dimension_numbers<[1], [0], [0], [1], [0, 0, 1, 1], [], []>} : vector<8x8xf32>, vector<8x8xf32>, vector<8x8xf32> -> vector<8x8xf32>
    %cst_100 = arith.constant 0.353553385 : f32
    %298 = vector.broadcast %cst_100 : f32 to vector<8x8xf32>
    %299 = arith.mulf %297, %298 : vector<8x8xf32>
    %300 = arith.minimumf %299, %210 : vector<8x8xf32>
    %cst_101 = arith.constant dense<0xFF800000> : vector<8xf32>
    %301 = vector.multi_reduction <maximumf>, %300, %cst_101 [1] : vector<8x8xf32> to vector<8xf32>
    %302 = vector.shape_cast %301 : vector<8xf32> to vector<8x1xf32>
    %303 = vector.broadcast %302 : vector<8x1xf32> to vector<8x8xf32>
    %304 = arith.subf %300, %303 : vector<8x8xf32>
    %305 = math.exp %304 : vector<8x8xf32>
    %cst_102 = arith.constant dense<0.000000e+00> : vector<8xf32>
    %306 = vector.multi_reduction <add>, %305, %cst_102 [1] : vector<8x8xf32> to vector<8xf32>
    %307 = vector.shape_cast %306 : vector<8xf32> to vector<8x1xf32>
    %308 = tpu.reciprocal %307 : vector<8x1xf32> -> vector<8x1xf32>
    %309 = vector.broadcast %308 : vector<8x1xf32> to vector<8x8xf32>
    %310 = arith.mulf %305, %309 : vector<8x8xf32>
    %cst_103 = arith.constant dense<0.000000e+00> : vector<8x8xf32>
    %311 = tpu.matmul %310, %295, %cst_103 {dimension_numbers = #tpu.dot_dimension_numbers<[1], [0], [0], [1], [0, 0, 1, 1], [], []>} : vector<8x8xf32>, vector<8x8xf32>, vector<8x8xf32> -> vector<8x8xf32>
    %312 = vector.extract_strided_slice %9 {offsets = [1, 0, 0], sizes = [1, 8, 32], strides = [1, 1, 1]} : vector<4x8x32xf32> to vector<1x8x32xf32>
    %313 = vector.shape_cast %312 : vector<1x8x32xf32> to vector<8x32xf32>
    %cst_104 = arith.constant dense<0.000000e+00> : vector<8x32xf32>
    %314 = tpu.matmul %311, %313, %cst_104 {dimension_numbers = #tpu.dot_dimension_numbers<[1], [0], [0], [1], [0, 0, 1, 1], [], []>} : vector<8x8xf32>, vector<8x32xf32>, vector<8x32xf32> -> vector<8x32xf32>
    %315 = arith.addf %274, %314 : vector<8x32xf32>
    %316 = vector.extract_strided_slice %3 {offsets = [2, 0, 0], sizes = [1, 32, 8], strides = [1, 1, 1]} : vector<4x32x8xf32> to vector<1x32x8xf32>
    %317 = vector.shape_cast %316 : vector<1x32x8xf32> to vector<32x8xf32>
    %cst_105 = arith.constant dense<0.000000e+00> : vector<8x8xf32>
    %318 = tpu.matmul %232, %317, %cst_105 {dimension_numbers = #tpu.dot_dimension_numbers<[1], [0], [0], [1], [0, 0, 1, 1], [], []>} : vector<8x32xf32>, vector<32x8xf32>, vector<8x8xf32> -> vector<8x8xf32>
    %319 = vector.extract_strided_slice %4 {offsets = [2, 0, 0], sizes = [1, 1, 8], strides = [1, 1, 1]} : vector<4x1x8xf32> to vector<1x1x8xf32>
    %320 = vector.shape_cast %319 : vector<1x1x8xf32> to vector<1x8xf32>
    %321 = vector.broadcast %320 : vector<1x8xf32> to vector<8x8xf32>
    %322 = arith.addf %318, %321 : vector<8x8xf32>
    %323 = vector.extract_strided_slice %5 {offsets = [2, 0, 0], sizes = [1, 32, 8], strides = [1, 1, 1]} : vector<4x32x8xf32> to vector<1x32x8xf32>
    %324 = vector.shape_cast %323 : vector<1x32x8xf32> to vector<32x8xf32>
    %cst_106 = arith.constant dense<0.000000e+00> : vector<8x8xf32>
    %325 = tpu.matmul %232, %324, %cst_106 {dimension_numbers = #tpu.dot_dimension_numbers<[1], [0], [0], [1], [0, 0, 1, 1], [], []>} : vector<8x32xf32>, vector<32x8xf32>, vector<8x8xf32> -> vector<8x8xf32>
    %326 = vector.extract_strided_slice %6 {offsets = [2, 0, 0], sizes = [1, 1, 8], strides = [1, 1, 1]} : vector<4x1x8xf32> to vector<1x1x8xf32>
    %327 = vector.shape_cast %326 : vector<1x1x8xf32> to vector<1x8xf32>
    %328 = vector.broadcast %327 : vector<1x8xf32> to vector<8x8xf32>
    %329 = arith.addf %325, %328 : vector<8x8xf32>
    %330 = vector.extract_strided_slice %7 {offsets = [2, 0, 0], sizes = [1, 32, 8], strides = [1, 1, 1]} : vector<4x32x8xf32> to vector<1x32x8xf32>
    %331 = vector.shape_cast %330 : vector<1x32x8xf32> to vector<32x8xf32>
    %cst_107 = arith.constant dense<0.000000e+00> : vector<8x8xf32>
    %332 = tpu.matmul %232, %331, %cst_107 {dimension_numbers = #tpu.dot_dimension_numbers<[1], [0], [0], [1], [0, 0, 1, 1], [], []>} : vector<8x32xf32>, vector<32x8xf32>, vector<8x8xf32> -> vector<8x8xf32>
    %333 = vector.extract_strided_slice %8 {offsets = [2, 0, 0], sizes = [1, 1, 8], strides = [1, 1, 1]} : vector<4x1x8xf32> to vector<1x1x8xf32>
    %334 = vector.shape_cast %333 : vector<1x1x8xf32> to vector<1x8xf32>
    %335 = vector.broadcast %334 : vector<1x8xf32> to vector<8x8xf32>
    %336 = arith.addf %332, %335 : vector<8x8xf32>
    %337 = tpu.transpose %329, [1, 0] : vector<8x8xf32> -> vector<8x8xf32>
    %cst_108 = arith.constant dense<0.000000e+00> : vector<8x8xf32>
    %338 = tpu.matmul %322, %337, %cst_108 {dimension_numbers = #tpu.dot_dimension_numbers<[1], [0], [0], [1], [0, 0, 1, 1], [], []>} : vector<8x8xf32>, vector<8x8xf32>, vector<8x8xf32> -> vector<8x8xf32>
    %cst_109 = arith.constant 0.353553385 : f32
    %339 = vector.broadcast %cst_109 : f32 to vector<8x8xf32>
    %340 = arith.mulf %338, %339 : vector<8x8xf32>
    %341 = arith.minimumf %340, %210 : vector<8x8xf32>
    %cst_110 = arith.constant dense<0xFF800000> : vector<8xf32>
    %342 = vector.multi_reduction <maximumf>, %341, %cst_110 [1] : vector<8x8xf32> to vector<8xf32>
    %343 = vector.shape_cast %342 : vector<8xf32> to vector<8x1xf32>
    %344 = vector.broadcast %343 : vector<8x1xf32> to vector<8x8xf32>
    %345 = arith.subf %341, %344 : vector<8x8xf32>
    %346 = math.exp %345 : vector<8x8xf32>
    %cst_111 = arith.constant dense<0.000000e+00> : vector<8xf32>
    %347 = vector.multi_reduction <add>, %346, %cst_111 [1] : vector<8x8xf32> to vector<8xf32>
    %348 = vector.shape_cast %347 : vector<8xf32> to vector<8x1xf32>
    %349 = tpu.reciprocal %348 : vector<8x1xf32> -> vector<8x1xf32>
    %350 = vector.broadcast %349 : vector<8x1xf32> to vector<8x8xf32>
    %351 = arith.mulf %346, %350 : vector<8x8xf32>
    %cst_112 = arith.constant dense<0.000000e+00> : vector<8x8xf32>
    %352 = tpu.matmul %351, %336, %cst_112 {dimension_numbers = #tpu.dot_dimension_numbers<[1], [0], [0], [1], [0, 0, 1, 1], [], []>} : vector<8x8xf32>, vector<8x8xf32>, vector<8x8xf32> -> vector<8x8xf32>
    %353 = vector.extract_strided_slice %9 {offsets = [2, 0, 0], sizes = [1, 8, 32], strides = [1, 1, 1]} : vector<4x8x32xf32> to vector<1x8x32xf32>
    %354 = vector.shape_cast %353 : vector<1x8x32xf32> to vector<8x32xf32>
    %cst_113 = arith.constant dense<0.000000e+00> : vector<8x32xf32>
    %355 = tpu.matmul %352, %354, %cst_113 {dimension_numbers = #tpu.dot_dimension_numbers<[1], [0], [0], [1], [0, 0, 1, 1], [], []>} : vector<8x8xf32>, vector<8x32xf32>, vector<8x32xf32> -> vector<8x32xf32>
    %356 = arith.addf %315, %355 : vector<8x32xf32>
    %357 = vector.extract_strided_slice %3 {offsets = [3, 0, 0], sizes = [1, 32, 8], strides = [1, 1, 1]} : vector<4x32x8xf32> to vector<1x32x8xf32>
    %358 = vector.shape_cast %357 : vector<1x32x8xf32> to vector<32x8xf32>
    %cst_114 = arith.constant dense<0.000000e+00> : vector<8x8xf32>
    %359 = tpu.matmul %232, %358, %cst_114 {dimension_numbers = #tpu.dot_dimension_numbers<[1], [0], [0], [1], [0, 0, 1, 1], [], []>} : vector<8x32xf32>, vector<32x8xf32>, vector<8x8xf32> -> vector<8x8xf32>
    %360 = vector.extract_strided_slice %4 {offsets = [3, 0, 0], sizes = [1, 1, 8], strides = [1, 1, 1]} : vector<4x1x8xf32> to vector<1x1x8xf32>
    %361 = vector.shape_cast %360 : vector<1x1x8xf32> to vector<1x8xf32>
    %362 = vector.broadcast %361 : vector<1x8xf32> to vector<8x8xf32>
    %363 = arith.addf %359, %362 : vector<8x8xf32>
    %364 = vector.extract_strided_slice %5 {offsets = [3, 0, 0], sizes = [1, 32, 8], strides = [1, 1, 1]} : vector<4x32x8xf32> to vector<1x32x8xf32>
    %365 = vector.shape_cast %364 : vector<1x32x8xf32> to vector<32x8xf32>
    %cst_115 = arith.constant dense<0.000000e+00> : vector<8x8xf32>
    %366 = tpu.matmul %232, %365, %cst_115 {dimension_numbers = #tpu.dot_dimension_numbers<[1], [0], [0], [1], [0, 0, 1, 1], [], []>} : vector<8x32xf32>, vector<32x8xf32>, vector<8x8xf32> -> vector<8x8xf32>
    %367 = vector.extract_strided_slice %6 {offsets = [3, 0, 0], sizes = [1, 1, 8], strides = [1, 1, 1]} : vector<4x1x8xf32> to vector<1x1x8xf32>
    %368 = vector.shape_cast %367 : vector<1x1x8xf32> to vector<1x8xf32>
    %369 = vector.broadcast %368 : vector<1x8xf32> to vector<8x8xf32>
    %370 = arith.addf %366, %369 : vector<8x8xf32>
    %371 = vector.extract_strided_slice %7 {offsets = [3, 0, 0], sizes = [1, 32, 8], strides = [1, 1, 1]} : vector<4x32x8xf32> to vector<1x32x8xf32>
    %372 = vector.shape_cast %371 : vector<1x32x8xf32> to vector<32x8xf32>
    %cst_116 = arith.constant dense<0.000000e+00> : vector<8x8xf32>
    %373 = tpu.matmul %232, %372, %cst_116 {dimension_numbers = #tpu.dot_dimension_numbers<[1], [0], [0], [1], [0, 0, 1, 1], [], []>} : vector<8x32xf32>, vector<32x8xf32>, vector<8x8xf32> -> vector<8x8xf32>
    %374 = vector.extract_strided_slice %8 {offsets = [3, 0, 0], sizes = [1, 1, 8], strides = [1, 1, 1]} : vector<4x1x8xf32> to vector<1x1x8xf32>
    %375 = vector.shape_cast %374 : vector<1x1x8xf32> to vector<1x8xf32>
    %376 = vector.broadcast %375 : vector<1x8xf32> to vector<8x8xf32>
    %377 = arith.addf %373, %376 : vector<8x8xf32>
    %378 = tpu.transpose %370, [1, 0] : vector<8x8xf32> -> vector<8x8xf32>
    %cst_117 = arith.constant dense<0.000000e+00> : vector<8x8xf32>
    %379 = tpu.matmul %363, %378, %cst_117 {dimension_numbers = #tpu.dot_dimension_numbers<[1], [0], [0], [1], [0, 0, 1, 1], [], []>} : vector<8x8xf32>, vector<8x8xf32>, vector<8x8xf32> -> vector<8x8xf32>
    %cst_118 = arith.constant 0.353553385 : f32
    %380 = vector.broadcast %cst_118 : f32 to vector<8x8xf32>
    %381 = arith.mulf %379, %380 : vector<8x8xf32>
    %382 = arith.minimumf %381, %210 : vector<8x8xf32>
    %cst_119 = arith.constant dense<0xFF800000> : vector<8xf32>
    %383 = vector.multi_reduction <maximumf>, %382, %cst_119 [1] : vector<8x8xf32> to vector<8xf32>
    %384 = vector.shape_cast %383 : vector<8xf32> to vector<8x1xf32>
    %385 = vector.broadcast %384 : vector<8x1xf32> to vector<8x8xf32>
    %386 = arith.subf %382, %385 : vector<8x8xf32>
    %387 = math.exp %386 : vector<8x8xf32>
    %cst_120 = arith.constant dense<0.000000e+00> : vector<8xf32>
    %388 = vector.multi_reduction <add>, %387, %cst_120 [1] : vector<8x8xf32> to vector<8xf32>
    %389 = vector.shape_cast %388 : vector<8xf32> to vector<8x1xf32>
    %390 = tpu.reciprocal %389 : vector<8x1xf32> -> vector<8x1xf32>
    %391 = vector.broadcast %390 : vector<8x1xf32> to vector<8x8xf32>
    %392 = arith.mulf %387, %391 : vector<8x8xf32>
    %cst_121 = arith.constant dense<0.000000e+00> : vector<8x8xf32>
    %393 = tpu.matmul %392, %377, %cst_121 {dimension_numbers = #tpu.dot_dimension_numbers<[1], [0], [0], [1], [0, 0, 1, 1], [], []>} : vector<8x8xf32>, vector<8x8xf32>, vector<8x8xf32> -> vector<8x8xf32>
    %394 = vector.extract_strided_slice %9 {offsets = [3, 0, 0], sizes = [1, 8, 32], strides = [1, 1, 1]} : vector<4x8x32xf32> to vector<1x8x32xf32>
    %395 = vector.shape_cast %394 : vector<1x8x32xf32> to vector<8x32xf32>
    %cst_122 = arith.constant dense<0.000000e+00> : vector<8x32xf32>
    %396 = tpu.matmul %393, %395, %cst_122 {dimension_numbers = #tpu.dot_dimension_numbers<[1], [0], [0], [1], [0, 0, 1, 1], [], []>} : vector<8x8xf32>, vector<8x32xf32>, vector<8x32xf32> -> vector<8x32xf32>
    %397 = arith.addf %356, %396 : vector<8x32xf32>
    %398 = vector.broadcast %2 : vector<1x32xf32> to vector<8x32xf32>
    %399 = arith.addf %397, %398 : vector<8x32xf32>
    %400 = arith.addf %208, %399 : vector<8x32xf32>
    %c1_123 = arith.constant 1 : index
    %c0_124 = arith.constant 0 : index
    %c0_125 = arith.constant 0 : index
    %401 = vector.load %arg13[%c1_123, %c0_124, %c0_125] : memref<2x8x32xf32, #tpu.memory_space<vmem>>, vector<1x8x32xf32>
    %402 = vector.shape_cast %401 : vector<1x8x32xf32> to vector<8x32xf32>
    %403 = vector.shape_cast %400 : vector<8x32xf32> to vector<1x8x32xf32>
    tpu.vector_store %arg13[%c1_123, %c0_124, %c0_125], %403 {strides = array<i32>} : memref<2x8x32xf32, #tpu.memory_space<vmem>>, vector<1x8x32xf32>,
    return
  }
  func.func @transform_0(%arg0: i32) -> (i32, i32, i32) {
    %c0_i32 = arith.constant 0 : i32
    %c0_i32_0 = arith.constant 0 : i32
    %c0_i32_1 = arith.constant 0 : i32
    return %arg0, %c0_i32, %c0_i32_0 : i32, i32, i32
  }
  func.func @transform_1(%arg0: i32) -> (i32, i32, i32) {
    %c0_i32 = arith.constant 0 : i32
    %c0_i32_0 = arith.constant 0 : i32
    %c0_i32_1 = arith.constant 0 : i32
    return %arg0, %c0_i32, %c0_i32_0 : i32, i32, i32
  }
  func.func @transform_2(%arg0: i32) -> (i32, i32) {
    %c0_i32 = arith.constant 0 : i32
    %c0_i32_0 = arith.constant 0 : i32
    %c0_i32_1 = arith.constant 0 : i32
    return %c0_i32, %c0_i32_0 : i32, i32
  }
  func.func @transform_3(%arg0: i32) -> (i32, i32) {
    %c0_i32 = arith.constant 0 : i32
    %c0_i32_0 = arith.constant 0 : i32
    %c0_i32_1 = arith.constant 0 : i32
    return %c0_i32, %c0_i32_0 : i32, i32
  }
  func.func @transform_4(%arg0: i32) -> (i32, i32, i32) {
    %c0_i32 = arith.constant 0 : i32
    %c0_i32_0 = arith.constant 0 : i32
    %c0_i32_1 = arith.constant 0 : i32
    %c0_i32_2 = arith.constant 0 : i32
    return %c0_i32, %c0_i32_0, %c0_i32_1 : i32, i32, i32
  }
  func.func @transform_5(%arg0: i32) -> (i32, i32, i32) {
    %c0_i32 = arith.constant 0 : i32
    %c0_i32_0 = arith.constant 0 : i32
    %c0_i32_1 = arith.constant 0 : i32
    %c0_i32_2 = arith.constant 0 : i32
    return %c0_i32, %c0_i32_0, %c0_i32_1 : i32, i32, i32
  }
  func.func @transform_6(%arg0: i32) -> (i32, i32, i32) {
    %c0_i32 = arith.constant 0 : i32
    %c0_i32_0 = arith.constant 0 : i32
    %c0_i32_1 = arith.constant 0 : i32
    %c0_i32_2 = arith.constant 0 : i32
    return %c0_i32, %c0_i32_0, %c0_i32_1 : i32, i32, i32
  }
  func.func @transform_7(%arg0: i32) -> (i32, i32, i32) {
    %c0_i32 = arith.constant 0 : i32
    %c0_i32_0 = arith.constant 0 : i32
    %c0_i32_1 = arith.constant 0 : i32
    %c0_i32_2 = arith.constant 0 : i32
    return %c0_i32, %c0_i32_0, %c0_i32_1 : i32, i32, i32
  }
  func.func @transform_8(%arg0: i32) -> (i32, i32, i32) {
    %c0_i32 = arith.constant 0 : i32
    %c0_i32_0 = arith.constant 0 : i32
    %c0_i32_1 = arith.constant 0 : i32
    %c0_i32_2 = arith.constant 0 : i32
    return %c0_i32, %c0_i32_0, %c0_i32_1 : i32, i32, i32
  }
  func.func @transform_9(%arg0: i32) -> (i32, i32, i32) {
    %c0_i32 = arith.constant 0 : i32
    %c0_i32_0 = arith.constant 0 : i32
    %c0_i32_1 = arith.constant 0 : i32
    %c0_i32_2 = arith.constant 0 : i32
    return %c0_i32, %c0_i32_0, %c0_i32_1 : i32, i32, i32
  }
  func.func @transform_10(%arg0: i32) -> (i32, i32, i32) {
    %c0_i32 = arith.constant 0 : i32
    %c0_i32_0 = arith.constant 0 : i32
    %c0_i32_1 = arith.constant 0 : i32
    %c0_i32_2 = arith.constant 0 : i32
    return %c0_i32, %c0_i32_0, %c0_i32_1 : i32, i32, i32
  }
  func.func @transform_11(%arg0: i32) -> (i32, i32) {
    %c0_i32 = arith.constant 0 : i32
    %c0_i32_0 = arith.constant 0 : i32
    %c0_i32_1 = arith.constant 0 : i32
    return %c0_i32, %c0_i32_0 : i32, i32
  }
  func.func @transform_12(%arg0: i32) -> (i32, i32, i32) {
    %c0_i32 = arith.constant 0 : i32
    %c0_i32_0 = arith.constant 0 : i32
    %c0_i32_1 = arith.constant 0 : i32
    return %arg0, %c0_i32, %c0_i32_0 : i32, i32, i32
  }
}

</mosaic_0001>

<llo_original>
// kernel: tpu_custom_call.1
$region0: #{tpu_custom_call.1}
  #allocation0 [shape = 'u32[]', space=smem, size = 0x4, offset = 0x4, fixed_abs, tag = 'smem constant byte address 0x4 - core index']
  #allocation1 [shape = 'u32[72,128]{1,0:T(1,128)}', space=vmem, size = 0x9000, scoped, tag = 'internal scratch']
  %s0 = inlined_call_operand.vmem [shape: f32[2,8,32], index: 0, kind: input, shape index: {}]
  %s1 = inlined_call_operand.vmem [shape: f32[2,8,8], index: 1, kind: input, shape index: {}]
  %s2 = inlined_call_operand.vmem [shape: f32[1,32], index: 2, kind: input, shape index: {}]
  %s3 = inlined_call_operand.vmem [shape: f32[1,32], index: 3, kind: input, shape index: {}]
  %s4 = inlined_call_operand.vmem [shape: f32[4,32,8], index: 4, kind: input, shape index: {}]
  %s5 = inlined_call_operand.vmem [shape: f32[4,1,8], index: 5, kind: input, shape index: {}]
  %s6 = inlined_call_operand.vmem [shape: f32[4,32,8], index: 6, kind: input, shape index: {}]
  %s7 = inlined_call_operand.vmem [shape: f32[4,1,8], index: 7, kind: input, shape index: {}]
  %s8 = inlined_call_operand.vmem [shape: f32[4,32,8], index: 8, kind: input, shape index: {}]
  %s9 = inlined_call_operand.vmem [shape: f32[4,1,8], index: 9, kind: input, shape index: {}]
  %s10 = inlined_call_operand.vmem [shape: f32[4,8,32], index: 10, kind: input, shape index: {}]
  %s11 = inlined_call_operand.vmem [shape: f32[1,32], index: 11, kind: input, shape index: {}]
  %s12 = inlined_call_operand.hbm [shape: f32[2,8,32], index: 12, kind: output, shape index: {}]
  %s13 = sld [smem:[#allocation0]]
  $region58: #{tpu_custom_call.1} parent=0
    _
  %s15 = ssub.s32 1, %s13
  %s16 = scalar_select 0, %s15, %s13
  $region1: #{tpu_custom_call.1} parent=0
    #allocation2 [shape = 'u8[8192]{0}', space=vmem, size = 0x2000, scoped, tag = 'output window, operand 0, single buffered']
    #allocation3 [shape = 's32[1]{0}', space=sflag, size = 0x4, scoped, tag = 'scoped memory for tpu_custom_call.1']
    %17 = vsyncpa [#allocation3], 0
    // Predicated region
    $region2: #{tpu_custom_call.1} parent=1 // pred_check
      _
    $region3: #{tpu_custom_call.1} parent=1 // pred_check_branch
      %19 = sbr.rel (0) target = $region5
    $region4: #{tpu_custom_call.1} parent=1 // pred_region
      _
    $region5: #{tpu_custom_call.1} parent=1 // pred_fallthru
      _
    // Predicated region
    $region6: #{tpu_custom_call.1} parent=1 // pred_check
      _
    $region7: #{tpu_custom_call.1} parent=1 // pred_check_branch
      %21 = sbr.rel (0) target = $region9
    $region8: #{tpu_custom_call.1} parent=1 // pred_region
      _
    $region9: #{tpu_custom_call.1} parent=1 // pred_fallthru
      _
    // Predicated region
    $region10: #{tpu_custom_call.1} parent=1 // pred_check
      _
    $region11: #{tpu_custom_call.1} parent=1 // pred_check_branch
      %23 = sbr.rel (0) target = $region13
    $region12: #{tpu_custom_call.1} parent=1 // pred_region
      _
    $region13: #{tpu_custom_call.1} parent=1 // pred_fallthru
      _
    // Predicated region
    $region14: #{tpu_custom_call.1} parent=1 // pred_check
      _
    $region15: #{tpu_custom_call.1} parent=1 // pred_check_branch
      %25 = sbr.rel (0) target = $region17
    $region16: #{tpu_custom_call.1} parent=1 // pred_region
      _
    $region17: #{tpu_custom_call.1} parent=1 // pred_fallthru
      _
    // Predicated region
    $region18: #{tpu_custom_call.1} parent=1 // pred_check
      _
    $region19: #{tpu_custom_call.1} parent=1 // pred_check_branch
      %27 = sbr.rel (0) target = $region21
    $region20: #{tpu_custom_call.1} parent=1 // pred_region
      _
    $region21: #{tpu_custom_call.1} parent=1 // pred_fallthru
      _
    // Predicated region
    $region22: #{tpu_custom_call.1} parent=1 // pred_check
      _
    $region23: #{tpu_custom_call.1} parent=1 // pred_check_branch
      %29 = sbr.rel (0) target = $region25
    $region24: #{tpu_custom_call.1} parent=1 // pred_region
      _
    $region25: #{tpu_custom_call.1} parent=1 // pred_fallthru
      _
    // Predicated region
    $region26: #{tpu_custom_call.1} parent=1 // pred_check
      _
    $region27: #{tpu_custom_call.1} parent=1 // pred_check_branch
      %31 = sbr.rel (0) target = $region29
    $region28: #{tpu_custom_call.1} parent=1 // pred_region
      _
    $region29: #{tpu_custom_call.1} parent=1 // pred_fallthru
      _
    // Predicated region
    $region30: #{tpu_custom_call.1} parent=1 // pred_check
      _
    $region31: #{tpu_custom_call.1} parent=1 // pred_check_branch
      %33 = sbr.rel (0) target = $region33
    $region32: #{tpu_custom_call.1} parent=1 // pred_region
      _
    $region33: #{tpu_custom_call.1} parent=1 // pred_fallthru
      _
    // Predicated region
    $region34: #{tpu_custom_call.1} parent=1 // pred_check
      _
    $region35: #{tpu_custom_call.1} parent=1 // pred_check_branch
      %35 = sbr.rel (0) target = $region37
    $region36: #{tpu_custom_call.1} parent=1 // pred_region
      _
    $region37: #{tpu_custom_call.1} parent=1 // pred_fallthru
      _
    // Predicated region
    $region38: #{tpu_custom_call.1} parent=1 // pred_check
      _
    $region39: #{tpu_custom_call.1} parent=1 // pred_check_branch
      %37 = sbr.rel (0) target = $region41
    $region40: #{tpu_custom_call.1} parent=1 // pred_region
      _
    $region41: #{tpu_custom_call.1} parent=1 // pred_fallthru
      _
    // Predicated region
    $region42: #{tpu_custom_call.1} parent=1 // pred_check
      _
    $region43: #{tpu_custom_call.1} parent=1 // pred_check_branch
      %39 = sbr.rel (0) target = $region45
    $region44: #{tpu_custom_call.1} parent=1 // pred_region
      _
    $region45: #{tpu_custom_call.1} parent=1 // pred_fallthru
      _
    // Predicated region
    $region46: #{tpu_custom_call.1} parent=1 // pred_check
      _
    $region47: #{tpu_custom_call.1} parent=1 // pred_check_branch
      %41 = sbr.rel (0) target = $region49
    $region48: #{tpu_custom_call.1} parent=1 // pred_region
      _
    $region49: #{tpu_custom_call.1} parent=1 // pred_fallthru
      _
    %v42 = vld [vmem:[%s2] sm:$0x1]
    %v43 = vld [vmem:[%s3] sm:$0x1]
    %v44 = vld [vmem:[%s11] sm:$0x1]
    %v45 = vld [vmem:[%s4] sm:$0xff]
    %v46 = vld [vmem:[%s4 + $0x8] sm:$0xff]
    %v47 = vld [vmem:[%s4 + $0x10] sm:$0xff]
    %v48 = vld [vmem:[%s4 + $0x18] sm:$0xff]
    %v49 = vld [vmem:[%s4 + $0x20] sm:$0xff]
    %v50 = vld [vmem:[%s4 + $0x28] sm:$0xff]
    %v51 = vld [vmem:[%s4 + $0x30] sm:$0xff]
    %v52 = vld [vmem:[%s4 + $0x38] sm:$0xff]
    %v53 = vld [vmem:[%s4 + $0x40] sm:$0xff]
    %v54 = vld [vmem:[%s4 + $0x48] sm:$0xff]
    %v55 = vld [vmem:[%s4 + $0x50] sm:$0xff]
    %v56 = vld [vmem:[%s4 + $0x58] sm:$0xff]
    %v57 = vld [vmem:[%s4 + $0x60] sm:$0xff]
    %v58 = vld [vmem:[%s4 + $0x68] sm:$0xff]
    %v59 = vld [vmem:[%s4 + $0x70] sm:$0xff]
    %v60 = vld [vmem:[%s4 + $0x78] sm:$0xff]
    %v61 = vld [vmem:[%s5] sm:$0x1]
    %v62 = vld [vmem:[%s5 + $0x1] sm:$0x1]
    %v63 = vld [vmem:[%s5 + $0x2] sm:$0x1]
    %v64 = vld [vmem:[%s5 + $0x3] sm:$0x1]
    %v65 = vld [vmem:[%s6] sm:$0xff]
    %v66 = vld [vmem:[%s6 + $0x8] sm:$0xff]
    %v67 = vld [vmem:[%s6 + $0x10] sm:$0xff]
    %v68 = vld [vmem:[%s6 + $0x18] sm:$0xff]
    %v69 = vld [vmem:[%s6 + $0x20] sm:$0xff]
    %v70 = vld [vmem:[%s6 + $0x28] sm:$0xff]
    %v71 = vld [vmem:[%s6 + $0x30] sm:$0xff]
    %v72 = vld [vmem:[%s6 + $0x38] sm:$0xff]
    %v73 = vld [vmem:[%s6 + $0x40] sm:$0xff]
    %v74 = vld [vmem:[%s6 + $0x48] sm:$0xff]
    %v75 = vld [vmem:[%s6 + $0x50] sm:$0xff]
    %v76 = vld [vmem:[%s6 + $0x58] sm:$0xff]
    %v77 = vld [vmem:[%s6 + $0x60] sm:$0xff]
    %v78 = vld [vmem:[%s6 + $0x68] sm:$0xff]
    %v79 = vld [vmem:[%s6 + $0x70] sm:$0xff]
    %v80 = vld [vmem:[%s6 + $0x78] sm:$0xff]
    %v81 = vld [vmem:[%s7] sm:$0x1]
    %v82 = vld [vmem:[%s7 + $0x1] sm:$0x1]
    %v83 = vld [vmem:[%s7 + $0x2] sm:$0x1]
    %v84 = vld [vmem:[%s7 + $0x3] sm:$0x1]
    %v85 = vld [vmem:[%s8] sm:$0xff]
    %v86 = vld [vmem:[%s8 + $0x8] sm:$0xff]
    %v87 = vld [vmem:[%s8 + $0x10] sm:$0xff]
    %v88 = vld [vmem:[%s8 + $0x18] sm:$0xff]
    %v89 = vld [vmem:[%s8 + $0x20] sm:$0xff]
    %v90 = vld [vmem:[%s8 + $0x28] sm:$0xff]
    %v91 = vld [vmem:[%s8 + $0x30] sm:$0xff]
    %v92 = vld [vmem:[%s8 + $0x38] sm:$0xff]
    %v93 = vld [vmem:[%s8 + $0x40] sm:$0xff]
    %v94 = vld [vmem:[%s8 + $0x48] sm:$0xff]
    %v95 = vld [vmem:[%s8 + $0x50] sm:$0xff]
    %v96 = vld [vmem:[%s8 + $0x58] sm:$0xff]
    %v97 = vld [vmem:[%s8 + $0x60] sm:$0xff]
    %v98 = vld [vmem:[%s8 + $0x68] sm:$0xff]
    %v99 = vld [vmem:[%s8 + $0x70] sm:$0xff]
    %v100 = vld [vmem:[%s8 + $0x78] sm:$0xff]
    %v101 = vld [vmem:[%s9] sm:$0x1]
    %v102 = vld [vmem:[%s9 + $0x1] sm:$0x1]
    %v103 = vld [vmem:[%s9 + $0x2] sm:$0x1]
    %v104 = vld [vmem:[%s9 + $0x3] sm:$0x1]
    %v105 = vld [vmem:[%s10] sm:$0xff]
    %v106 = vld [vmem:[%s10 + $0x8] sm:$0xff]
    %v107 = vld [vmem:[%s10 + $0x10] sm:$0xff]
    %v108 = vld [vmem:[%s10 + $0x18] sm:$0xff]
    %v109 = vld [vmem:[%s0] sm:$0xff]
    %v110 = vld [vmem:[%s1] sm:$0xff]
    %vm111 = vcmask 261120
    %v112 = vsel %vm111, %v109, 0.0
    %113 = vadd.xlane.f32.xlu0 %v112
    %v114 = vpop.xlane.xlu0 %113
    %v115 = vrcp.pop 32.0
    %v116 = vmul.f32 32.0, %v115
    %v117 = vsub.f32 1.0, %v116
    %v118 = vmul.f32 %v115, %v117
    %v119 = vadd.f32 %v115, %v118
    %vm120 = vweird.f32 %v115
    %v121 = vsel %vm120, %v115, %v119
    %v122 = vmul.f32 %v114, %v121
    %v123 = vsub.f32 %v109, %v122
    %v124 = vmul.f32 %v123, %v123
    %v125 = vsel %vm111, %v124, 0.0
    %126 = vadd.xlane.f32.xlu0 %v125
    %v127 = vpop.xlane.xlu0 %126
    %v128 = vmul.f32 %v127, %v121
    %v129 = vadd.f32 %v128, 1e-06
    %v130 = vrsqrt.pop %v129
    %v131 = vmul.f32 %v130, %v129
    %v132 = vmul.f32 %v131, %v130
    %v133 = vmul.f32 0.5, %v132
    %v134 = vsub.f32 1.5, %v133
    %v135 = vmul.f32 %v130, %v134
    %vm136 = vweird.f32 %v129
    %vm137 = vweird.f32 %v130
    %vm138 = vmor %vm136, %vm137
    %v139 = vsel %vm138, %v130, %v135
    %v140 = vmul.f32 %v123, %v139
    %v142 = vperm.slane %v42, 0
    %v144 = vmul.f32 %v140, %v142
    %v146 = vperm.slane %v43, 0
    %v148 = vadd.f32 %v144, %v146
    %v150 = vperm.slane %v61, 0
    %v153 = vsel %vm111, %v148, 0
    %155 = vmatpush.msra.mxu0 0.0
    %156 = vmatpush.msra.mxu0 0.0
    %157 = vmatpush.msra.mxu0 0.0
    %158 = vmatpush.msra.mxu0 0.0
    %159 = vmatpush.msra.mxu0 0.0
    %160 = vmatpush.msra.mxu0 0.0
    %161 = vmatpush.msra.mxu0 0.0
    %162 = vmatpush.msra.mxu0 0.0
    %163 = vmatpush.msra.mxu0 0.0
    %164 = vmatpush.msra.mxu0 0.0
    %165 = vmatpush.msra.mxu0 0.0
    %166 = vmatpush.msra.mxu0 0.0
    %167 = vmatpush.msra.mxu0 %v48
    %168 = vmatpush.msra.mxu0 %v47
    %169 = vmatpush.msra.mxu0 %v46
    %170 = vmatpush.msra.mxu0 %v45
    %171 = vmatmul.f32.gmra.mxu0 %v153
    %v172 = vpop.f32.mrf.mxu0
    %v173 = vadd.f32 %v150, %v172
    %174 = vdwg.mxu0
    %v176 = vperm.slane %v81, 0
    %178 = vmatpush.msra.mxu0 0.0
    %179 = vmatpush.msra.mxu0 0.0
    %180 = vmatpush.msra.mxu0 0.0
    %181 = vmatpush.msra.mxu0 0.0
    %182 = vmatpush.msra.mxu0 0.0
    %183 = vmatpush.msra.mxu0 0.0
    %184 = vmatpush.msra.mxu0 0.0
    %185 = vmatpush.msra.mxu0 0.0
    %186 = vmatpush.msra.mxu0 0.0
    %187 = vmatpush.msra.mxu0 0.0
    %188 = vmatpush.msra.mxu0 0.0
    %189 = vmatpush.msra.mxu0 0.0
    %190 = vmatpush.msra.mxu0 %v68
    %191 = vmatpush.msra.mxu0 %v67
    %192 = vmatpush.msra.mxu0 %v66
    %193 = vmatpush.msra.mxu0 %v65
    %194 = vmatmul.f32.gmra.mxu0 %v153
    %v195 = vpop.f32.mrf.mxu0
    %v196 = vadd.f32 %v176, %v195
    %197 = vdwg.mxu0
    %v199 = vperm.slane %v101, 0
    %201 = vmatpush.msra.mxu0 0.0
    %202 = vmatpush.msra.mxu0 0.0
    %203 = vmatpush.msra.mxu0 0.0
    %204 = vmatpush.msra.mxu0 0.0
    %205 = vmatpush.msra.mxu0 0.0
    %206 = vmatpush.msra.mxu0 0.0
    %207 = vmatpush.msra.mxu0 0.0
    %208 = vmatpush.msra.mxu0 0.0
    %209 = vmatpush.msra.mxu0 0.0
    %210 = vmatpush.msra.mxu0 0.0
    %211 = vmatpush.msra.mxu0 0.0
    %212 = vmatpush.msra.mxu0 0.0
    %213 = vmatpush.msra.mxu0 %v88
    %214 = vmatpush.msra.mxu0 %v87
    %215 = vmatpush.msra.mxu0 %v86
    %216 = vmatpush.msra.mxu0 %v85
    %217 = vmatmul.f32.gmra.mxu0 %v153
    %v218 = vpop.f32.mrf.mxu0
    %v219 = vadd.f32 %v199, %v218
    %220 = vdwg.mxu0
    %vm221 = vcmask 64512
    %v223 = vsel %vm221, %v173, 0
    %v226 = vsel %vm221, %v196, 0
    %228 = vmatpush.xpose.msra.mxu0 0.0
    %229 = vmatpush.xpose.msra.mxu0 0.0
    %230 = vmatpush.xpose.msra.mxu0 0.0
    %231 = vmatpush.xpose.msra.mxu0 0.0
    %232 = vmatpush.xpose.msra.mxu0 0.0
    %233 = vmatpush.xpose.msra.mxu0 0.0
    %234 = vmatpush.xpose.msra.mxu0 0.0
    %235 = vmatpush.xpose.msra.mxu0 0.0
    %236 = vmatpush.xpose.msra.mxu0 0.0
    %237 = vmatpush.xpose.msra.mxu0 0.0
    %238 = vmatpush.xpose.msra.mxu0 0.0
    %239 = vmatpush.xpose.msra.mxu0 0.0
    %240 = vmatpush.xpose.msra.mxu0 0.0
    %241 = vmatpush.xpose.msra.mxu0 0.0
    %242 = vmatpush.xpose.msra.mxu0 0.0
    %243 = vmatpush.xpose.msra.mxu0 %v226
    %244 = vmatmul.f32.gmra.mxu0 %v223
    %v245 = vpop.f32.mrf.mxu0
    %v246 = vadd.f32 0.0, %v245
    %247 = vdwg.mxu0
    %v248 = vmul.f32 %v246, 0.35355338
    %v249 = vmin.f32 %v248, %v110
    %v250 = vsel %vm221, %v249, -inf
    %251 = vmax.xlane.f32.xlu0 %v250
    %v252 = vpop.xlane.xlu0 %251
    %v253 = vsub.f32 %v249, %v252
    %v254 = vmul.f32 %v253, 1.442695
    %v255 = vpow.pop %v254
    %v256 = vsel %vm221, %v255, 0.0
    %257 = vadd.xlane.f32.xlu0 %v256
    %v258 = vpop.xlane.xlu0 %257
    %v259 = vrcp.pop %v258
    %v260 = vmul.f32 %v258, %v259
    %v261 = vsub.f32 1.0, %v260
    %v262 = vmul.f32 %v259, %v261
    %v263 = vadd.f32 %v259, %v262
    %vm264 = vweird.f32 %v258
    %vm265 = vweird.f32 %v259
    %vm266 = vmor %vm264, %vm265
    %v267 = vsel %vm266, %v259, %v263
    %v268 = vand.u32 2147483647, %v258
    %vm269 = vcmp.eq.f32.partialorder %v268, 8.507059e+37
    %v270 = vand.u32 %v258, 2147483648
    %v271 = vor.u32 1.1754944e-38, %v270
    %v272 = vsel %vm269, %v271, %v267
    %v273 = vmul.f32 %v255, %v272
    %v275 = vsel %vm221, %v273, 0
    %277 = vmatpush.msra.mxu0 0.0
    %278 = vmatpush.msra.mxu0 0.0
    %279 = vmatpush.msra.mxu0 0.0
    %280 = vmatpush.msra.mxu0 0.0
    %281 = vmatpush.msra.mxu0 0.0
    %282 = vmatpush.msra.mxu0 0.0
    %283 = vmatpush.msra.mxu0 0.0
    %284 = vmatpush.msra.mxu0 0.0
    %285 = vmatpush.msra.mxu0 0.0
    %286 = vmatpush.msra.mxu0 0.0
    %287 = vmatpush.msra.mxu0 0.0
    %288 = vmatpush.msra.mxu0 0.0
    %289 = vmatpush.msra.mxu0 0.0
    %290 = vmatpush.msra.mxu0 0.0
    %291 = vmatpush.msra.mxu0 0.0
    %292 = vmatpush.msra.mxu0 %v219
    %293 = vmatmul.f32.gmra.mxu0 %v275
    %v294 = vpop.f32.mrf.mxu0
    %v295 = vadd.f32 0.0, %v294
    %296 = vdwg.mxu0
    %v298 = vperm.slane %v62, 0
    %300 = vmatpush.msra.mxu0 0.0
    %301 = vmatpush.msra.mxu0 0.0
    %302 = vmatpush.msra.mxu0 0.0
    %303 = vmatpush.msra.mxu0 0.0
    %304 = vmatpush.msra.mxu0 0.0
    %305 = vmatpush.msra.mxu0 0.0
    %306 = vmatpush.msra.mxu0 0.0
    %307 = vmatpush.msra.mxu0 0.0
    %308 = vmatpush.msra.mxu0 0.0
    %309 = vmatpush.msra.mxu0 0.0
    %310 = vmatpush.msra.mxu0 0.0
    %311 = vmatpush.msra.mxu0 0.0
    %312 = vmatpush.msra.mxu0 %v52
    %313 = vmatpush.msra.mxu0 %v51
    %314 = vmatpush.msra.mxu0 %v50
    %315 = vmatpush.msra.mxu0 %v49
    %316 = vmatmul.f32.gmra.mxu0 %v153
    %v317 = vpop.f32.mrf.mxu0
    %v318 = vadd.f32 %v298, %v317
    %319 = vdwg.mxu0
    %v321 = vperm.slane %v82, 0
    %323 = vmatpush.msra.mxu0 0.0
    %324 = vmatpush.msra.mxu0 0.0
    %325 = vmatpush.msra.mxu0 0.0
    %326 = vmatpush.msra.mxu0 0.0
    %327 = vmatpush.msra.mxu0 0.0
    %328 = vmatpush.msra.mxu0 0.0
    %329 = vmatpush.msra.mxu0 0.0
    %330 = vmatpush.msra.mxu0 0.0
    %331 = vmatpush.msra.mxu0 0.0
    %332 = vmatpush.msra.mxu0 0.0
    %333 = vmatpush.msra.mxu0 0.0
    %334 = vmatpush.msra.mxu0 0.0
    %335 = vmatpush.msra.mxu0 %v72
    %336 = vmatpush.msra.mxu0 %v71
    %337 = vmatpush.msra.mxu0 %v70
    %338 = vmatpush.msra.mxu0 %v69
    %339 = vmatmul.f32.gmra.mxu0 %v153
    %v340 = vpop.f32.mrf.mxu0
    %v341 = vadd.f32 %v321, %v340
    %342 = vdwg.mxu0
    %v344 = vperm.slane %v102, 0
    %346 = vmatpush.msra.mxu0 0.0
    %347 = vmatpush.msra.mxu0 0.0
    %348 = vmatpush.msra.mxu0 0.0
    %349 = vmatpush.msra.mxu0 0.0
    %350 = vmatpush.msra.mxu0 0.0
    %351 = vmatpush.msra.mxu0 0.0
    %352 = vmatpush.msra.mxu0 0.0
    %353 = vmatpush.msra.mxu0 0.0
    %354 = vmatpush.msra.mxu0 0.0
    %355 = vmatpush.msra.mxu0 0.0
    %356 = vmatpush.msra.mxu0 0.0
    %357 = vmatpush.msra.mxu0 0.0
    %358 = vmatpush.msra.mxu0 %v92
    %359 = vmatpush.msra.mxu0 %v91
    %360 = vmatpush.msra.mxu0 %v90
    %361 = vmatpush.msra.mxu0 %v89
    %362 = vmatmul.f32.gmra.mxu0 %v153
    %v363 = vpop.f32.mrf.mxu0
    %v364 = vadd.f32 %v344, %v363
    %365 = vdwg.mxu0
    %v367 = vsel %vm221, %v318, 0
    %v370 = vsel %vm221, %v341, 0
    %372 = vmatpush.xpose.msra.mxu0 0.0
    %373 = vmatpush.xpose.msra.mxu0 0.0
    %374 = vmatpush.xpose.msra.mxu0 0.0
    %375 = vmatpush.xpose.msra.mxu0 0.0
    %376 = vmatpush.xpose.msra.mxu0 0.0
    %377 = vmatpush.xpose.msra.mxu0 0.0
    %378 = vmatpush.xpose.msra.mxu0 0.0
    %379 = vmatpush.xpose.msra.mxu0 0.0
    %380 = vmatpush.xpose.msra.mxu0 0.0
    %381 = vmatpush.xpose.msra.mxu0 0.0
    %382 = vmatpush.xpose.msra.mxu0 0.0
    %383 = vmatpush.xpose.msra.mxu0 0.0
    %384 = vmatpush.xpose.msra.mxu0 0.0
    %385 = vmatpush.xpose.msra.mxu0 0.0
    %386 = vmatpush.xpose.msra.mxu0 0.0
    %387 = vmatpush.xpose.msra.mxu0 %v370
    %388 = vmatmul.f32.gmra.mxu0 %v367
    %v389 = vpop.f32.mrf.mxu0
    %v390 = vadd.f32 0.0, %v389
    %391 = vdwg.mxu0
    %v392 = vmul.f32 %v390, 0.35355338
    %v393 = vmin.f32 %v392, %v110
    %v394 = vsel %vm221, %v393, -inf
    %395 = vmax.xlane.f32.xlu0 %v394
    %v396 = vpop.xlane.xlu0 %395
    %v397 = vsub.f32 %v393, %v396
    %v398 = vmul.f32 %v397, 1.442695
    %v399 = vpow.pop %v398
    %v400 = vsel %vm221, %v399, 0.0
    %401 = vadd.xlane.f32.xlu0 %v400
    %v402 = vpop.xlane.xlu0 %401
    %v403 = vrcp.pop %v402
    %v404 = vmul.f32 %v402, %v403
    %v405 = vsub.f32 1.0, %v404
    %v406 = vmul.f32 %v403, %v405
    %v407 = vadd.f32 %v403, %v406
    %vm408 = vweird.f32 %v402
    %vm409 = vweird.f32 %v403
    %vm410 = vmor %vm408, %vm409
    %v411 = vsel %vm410, %v403, %v407
    %v412 = vand.u32 2147483647, %v402
    %vm413 = vcmp.eq.f32.partialorder %v412, 8.507059e+37
    %v414 = vand.u32 %v402, 2147483648
    %v415 = vor.u32 1.1754944e-38, %v414
    %v416 = vsel %vm413, %v415, %v411
    %v417 = vmul.f32 %v399, %v416
    %v419 = vsel %vm221, %v417, 0
    %421 = vmatpush.msra.mxu0 0.0
    %422 = vmatpush.msra.mxu0 0.0
    %423 = vmatpush.msra.mxu0 0.0
    %424 = vmatpush.msra.mxu0 0.0
    %425 = vmatpush.msra.mxu0 0.0
    %426 = vmatpush.msra.mxu0 0.0
    %427 = vmatpush.msra.mxu0 0.0
    %428 = vmatpush.msra.mxu0 0.0
    %429 = vmatpush.msra.mxu0 0.0
    %430 = vmatpush.msra.mxu0 0.0
    %431 = vmatpush.msra.mxu0 0.0
    %432 = vmatpush.msra.mxu0 0.0
    %433 = vmatpush.msra.mxu0 0.0
    %434 = vmatpush.msra.mxu0 0.0
    %435 = vmatpush.msra.mxu0 0.0
    %436 = vmatpush.msra.mxu0 %v364
    %437 = vmatmul.f32.gmra.mxu0 %v419
    %v438 = vpop.f32.mrf.mxu0
    %v439 = vadd.f32 0.0, %v438
    %440 = vdwg.mxu0
    %v442 = vsel %vm221, %v439, 0
    %444 = vmatpush.msra.mxu0 0.0
    %445 = vmatpush.msra.mxu0 0.0
    %446 = vmatpush.msra.mxu0 0.0
    %447 = vmatpush.msra.mxu0 0.0
    %448 = vmatpush.msra.mxu0 0.0
    %449 = vmatpush.msra.mxu0 0.0
    %450 = vmatpush.msra.mxu0 0.0
    %451 = vmatpush.msra.mxu0 0.0
    %452 = vmatpush.msra.mxu0 0.0
    %453 = vmatpush.msra.mxu0 0.0
    %454 = vmatpush.msra.mxu0 0.0
    %455 = vmatpush.msra.mxu0 0.0
    %456 = vmatpush.msra.mxu0 0.0
    %457 = vmatpush.msra.mxu0 0.0
    %458 = vmatpush.msra.mxu0 0.0
    %459 = vmatpush.msra.mxu0 %v106
    %460 = vmatmul.f32.gmra.mxu0 %v442
    %v461 = vpop.f32.mrf.mxu0
    %v462 = vadd.f32 0.0, %v461
    %463 = vdwg.mxu0
    %v465 = vsel %vm221, %v295, 0
    %467 = vmatpush.msra.mxu0 0.0
    %468 = vmatpush.msra.mxu0 0.0
    %469 = vmatpush.msra.mxu0 0.0
    %470 = vmatpush.msra.mxu0 0.0
    %471 = vmatpush.msra.mxu0 0.0
    %472 = vmatpush.msra.mxu0 0.0
    %473 = vmatpush.msra.mxu0 0.0
    %474 = vmatpush.msra.mxu0 0.0
    %475 = vmatpush.msra.mxu0 0.0
    %476 = vmatpush.msra.mxu0 0.0
    %477 = vmatpush.msra.mxu0 0.0
    %478 = vmatpush.msra.mxu0 0.0
    %479 = vmatpush.msra.mxu0 0.0
    %480 = vmatpush.msra.mxu0 0.0
    %481 = vmatpush.msra.mxu0 0.0
    %482 = vmatpush.msra.mxu0 %v105
    %483 = vmatmul.f32.gmra.mxu0 %v465
    %v484 = vpop.f32.mrf.mxu0
    %v485 = vadd.f32 %v462, %v484
    %486 = vdwg.mxu0
    %v488 = vperm.slane %v63, 0
    %490 = vmatpush.msra.mxu0 0.0
    %491 = vmatpush.msra.mxu0 0.0
    %492 = vmatpush.msra.mxu0 0.0
    %493 = vmatpush.msra.mxu0 0.0
    %494 = vmatpush.msra.mxu0 0.0
    %495 = vmatpush.msra.mxu0 0.0
    %496 = vmatpush.msra.mxu0 0.0
    %497 = vmatpush.msra.mxu0 0.0
    %498 = vmatpush.msra.mxu0 0.0
    %499 = vmatpush.msra.mxu0 0.0
    %500 = vmatpush.msra.mxu0 0.0
    %501 = vmatpush.msra.mxu0 0.0
    %502 = vmatpush.msra.mxu0 %v56
    %503 = vmatpush.msra.mxu0 %v55
    %504 = vmatpush.msra.mxu0 %v54
    %505 = vmatpush.msra.mxu0 %v53
    %506 = vmatmul.f32.gmra.mxu0 %v153
    %v507 = vpop.f32.mrf.mxu0
    %v508 = vadd.f32 %v488, %v507
    %509 = vdwg.mxu0
    %v511 = vperm.slane %v83, 0
    %513 = vmatpush.msra.mxu0 0.0
    %514 = vmatpush.msra.mxu0 0.0
    %515 = vmatpush.msra.mxu0 0.0
    %516 = vmatpush.msra.mxu0 0.0
    %517 = vmatpush.msra.mxu0 0.0
    %518 = vmatpush.msra.mxu0 0.0
    %519 = vmatpush.msra.mxu0 0.0
    %520 = vmatpush.msra.mxu0 0.0
    %521 = vmatpush.msra.mxu0 0.0
    %522 = vmatpush.msra.mxu0 0.0
    %523 = vmatpush.msra.mxu0 0.0
    %524 = vmatpush.msra.mxu0 0.0
    %525 = vmatpush.msra.mxu0 %v76
    %526 = vmatpush.msra.mxu0 %v75
    %527 = vmatpush.msra.mxu0 %v74
    %528 = vmatpush.msra.mxu0 %v73
    %529 = vmatmul.f32.gmra.mxu0 %v153
    %v530 = vpop.f32.mrf.mxu0
    %v531 = vadd.f32 %v511, %v530
    %532 = vdwg.mxu0
    %v534 = vperm.slane %v103, 0
    %536 = vmatpush.msra.mxu0 0.0
    %537 = vmatpush.msra.mxu0 0.0
    %538 = vmatpush.msra.mxu0 0.0
    %539 = vmatpush.msra.mxu0 0.0
    %540 = vmatpush.msra.mxu0 0.0
    %541 = vmatpush.msra.mxu0 0.0
    %542 = vmatpush.msra.mxu0 0.0
    %543 = vmatpush.msra.mxu0 0.0
    %544 = vmatpush.msra.mxu0 0.0
    %545 = vmatpush.msra.mxu0 0.0
    %546 = vmatpush.msra.mxu0 0.0
    %547 = vmatpush.msra.mxu0 0.0
    %548 = vmatpush.msra.mxu0 %v96
    %549 = vmatpush.msra.mxu0 %v95
    %550 = vmatpush.msra.mxu0 %v94
    %551 = vmatpush.msra.mxu0 %v93
    %552 = vmatmul.f32.gmra.mxu0 %v153
    %v553 = vpop.f32.mrf.mxu0
    %v554 = vadd.f32 %v534, %v553
    %555 = vdwg.mxu0
    %v557 = vsel %vm221, %v508, 0
    %v560 = vsel %vm221, %v531, 0
    %562 = vmatpush.xpose.msra.mxu0 0.0
    %563 = vmatpush.xpose.msra.mxu0 0.0
    %564 = vmatpush.xpose.msra.mxu0 0.0
    %565 = vmatpush.xpose.msra.mxu0 0.0
    %566 = vmatpush.xpose.msra.mxu0 0.0
    %567 = vmatpush.xpose.msra.mxu0 0.0
    %568 = vmatpush.xpose.msra.mxu0 0.0
    %569 = vmatpush.xpose.msra.mxu0 0.0
    %570 = vmatpush.xpose.msra.mxu0 0.0
    %571 = vmatpush.xpose.msra.mxu0 0.0
    %572 = vmatpush.xpose.msra.mxu0 0.0
    %573 = vmatpush.xpose.msra.mxu0 0.0
    %574 = vmatpush.xpose.msra.mxu0 0.0
    %575 = vmatpush.xpose.msra.mxu0 0.0
    %576 = vmatpush.xpose.msra.mxu0 0.0
    %577 = vmatpush.xpose.msra.mxu0 %v560
    %578 = vmatmul.f32.gmra.mxu0 %v557
    %v579 = vpop.f32.mrf.mxu0
    %v580 = vadd.f32 0.0, %v579
    %581 = vdwg.mxu0
    %v582 = vmul.f32 %v580, 0.35355338
    %v583 = vmin.f32 %v582, %v110
    %v584 = vsel %vm221, %v583, -inf
    %585 = vmax.xlane.f32.xlu0 %v584
    %v586 = vpop.xlane.xlu0 %585
    %v587 = vsub.f32 %v583, %v586
    %v588 = vmul.f32 %v587, 1.442695
    %v589 = vpow.pop %v588
    %v590 = vsel %vm221, %v589, 0.0
    %591 = vadd.xlane.f32.xlu0 %v590
    %v592 = vpop.xlane.xlu0 %591
    %v593 = vrcp.pop %v592
    %v594 = vmul.f32 %v592, %v593
    %v595 = vsub.f32 1.0, %v594
    %v596 = vmul.f32 %v593, %v595
    %v597 = vadd.f32 %v593, %v596
    %vm598 = vweird.f32 %v592
    %vm599 = vweird.f32 %v593
    %vm600 = vmor %vm598, %vm599
    %v601 = vsel %vm600, %v593, %v597
    %v602 = vand.u32 2147483647, %v592
    %vm603 = vcmp.eq.f32.partialorder %v602, 8.507059e+37
    %v604 = vand.u32 %v592, 2147483648
    %v605 = vor.u32 1.1754944e-38, %v604
    %v606 = vsel %vm603, %v605, %v601
    %v607 = vmul.f32 %v589, %v606
    %v609 = vsel %vm221, %v607, 0
    %611 = vmatpush.msra.mxu0 0.0
    %612 = vmatpush.msra.mxu0 0.0
    %613 = vmatpush.msra.mxu0 0.0
    %614 = vmatpush.msra.mxu0 0.0
    %615 = vmatpush.msra.mxu0 0.0
    %616 = vmatpush.msra.mxu0 0.0
    %617 = vmatpush.msra.mxu0 0.0
    %618 = vmatpush.msra.mxu0 0.0
    %619 = vmatpush.msra.mxu0 0.0
    %620 = vmatpush.msra.mxu0 0.0
    %621 = vmatpush.msra.mxu0 0.0
    %622 = vmatpush.msra.mxu0 0.0
    %623 = vmatpush.msra.mxu0 0.0
    %624 = vmatpush.msra.mxu0 0.0
    %625 = vmatpush.msra.mxu0 0.0
    %626 = vmatpush.msra.mxu0 %v554
    %627 = vmatmul.f32.gmra.mxu0 %v609
    %v628 = vpop.f32.mrf.mxu0
    %v629 = vadd.f32 0.0, %v628
    %630 = vdwg.mxu0
    %v632 = vsel %vm221, %v629, 0
    %634 = vmatpush.msra.mxu0 0.0
    %635 = vmatpush.msra.mxu0 0.0
    %636 = vmatpush.msra.mxu0 0.0
    %637 = vmatpush.msra.mxu0 0.0
    %638 = vmatpush.msra.mxu0 0.0
    %639 = vmatpush.msra.mxu0 0.0
    %640 = vmatpush.msra.mxu0 0.0
    %641 = vmatpush.msra.mxu0 0.0
    %642 = vmatpush.msra.mxu0 0.0
    %643 = vmatpush.msra.mxu0 0.0
    %644 = vmatpush.msra.mxu0 0.0
    %645 = vmatpush.msra.mxu0 0.0
    %646 = vmatpush.msra.mxu0 0.0
    %647 = vmatpush.msra.mxu0 0.0
    %648 = vmatpush.msra.mxu0 0.0
    %649 = vmatpush.msra.mxu0 %v107
    %650 = vmatmul.f32.gmra.mxu0 %v632
    %v651 = vpop.f32.mrf.mxu0
    %v652 = vadd.f32 0.0, %v651
    %653 = vdwg.mxu0
    %v654 = vadd.f32 %v485, %v652
    %v656 = vperm.slane %v64, 0
    %658 = vmatpush.msra.mxu0 0.0
    %659 = vmatpush.msra.mxu0 0.0
    %660 = vmatpush.msra.mxu0 0.0
    %661 = vmatpush.msra.mxu0 0.0
    %662 = vmatpush.msra.mxu0 0.0
    %663 = vmatpush.msra.mxu0 0.0
    %664 = vmatpush.msra.mxu0 0.0
    %665 = vmatpush.msra.mxu0 0.0
    %666 = vmatpush.msra.mxu0 0.0
    %667 = vmatpush.msra.mxu0 0.0
    %668 = vmatpush.msra.mxu0 0.0
    %669 = vmatpush.msra.mxu0 0.0
    %670 = vmatpush.msra.mxu0 %v60
    %671 = vmatpush.msra.mxu0 %v59
    %672 = vmatpush.msra.mxu0 %v58
    %673 = vmatpush.msra.mxu0 %v57
    %674 = vmatmul.f32.gmra.mxu0 %v153
    %v675 = vpop.f32.mrf.mxu0
    %v676 = vadd.f32 %v656, %v675
    %677 = vdwg.mxu0
    %v679 = vperm.slane %v84, 0
    %681 = vmatpush.msra.mxu0 0.0
    %682 = vmatpush.msra.mxu0 0.0
    %683 = vmatpush.msra.mxu0 0.0
    %684 = vmatpush.msra.mxu0 0.0
    %685 = vmatpush.msra.mxu0 0.0
    %686 = vmatpush.msra.mxu0 0.0
    %687 = vmatpush.msra.mxu0 0.0
    %688 = vmatpush.msra.mxu0 0.0
    %689 = vmatpush.msra.mxu0 0.0
    %690 = vmatpush.msra.mxu0 0.0
    %691 = vmatpush.msra.mxu0 0.0
    %692 = vmatpush.msra.mxu0 0.0
    %693 = vmatpush.msra.mxu0 %v80
    %694 = vmatpush.msra.mxu0 %v79
    %695 = vmatpush.msra.mxu0 %v78
    %696 = vmatpush.msra.mxu0 %v77
    %697 = vmatmul.f32.gmra.mxu0 %v153
    %v698 = vpop.f32.mrf.mxu0
    %v699 = vadd.f32 %v679, %v698
    %700 = vdwg.mxu0
    %v702 = vperm.slane %v104, 0
    %704 = vmatpush.msra.mxu0 0.0
    %705 = vmatpush.msra.mxu0 0.0
    %706 = vmatpush.msra.mxu0 0.0
    %707 = vmatpush.msra.mxu0 0.0
    %708 = vmatpush.msra.mxu0 0.0
    %709 = vmatpush.msra.mxu0 0.0
    %710 = vmatpush.msra.mxu0 0.0
    %711 = vmatpush.msra.mxu0 0.0
    %712 = vmatpush.msra.mxu0 0.0
    %713 = vmatpush.msra.mxu0 0.0
    %714 = vmatpush.msra.mxu0 0.0
    %715 = vmatpush.msra.mxu0 0.0
    %716 = vmatpush.msra.mxu0 %v100
    %717 = vmatpush.msra.mxu0 %v99
    %718 = vmatpush.msra.mxu0 %v98
    %719 = vmatpush.msra.mxu0 %v97
    %720 = vmatmul.f32.gmra.mxu0 %v153
    %v721 = vpop.f32.mrf.mxu0
    %v722 = vadd.f32 %v702, %v721
    %723 = vdwg.mxu0
    %v725 = vsel %vm221, %v676, 0
    %v728 = vsel %vm221, %v699, 0
    %730 = vmatpush.xpose.msra.mxu0 0.0
    %731 = vmatpush.xpose.msra.mxu0 0.0
    %732 = vmatpush.xpose.msra.mxu0 0.0
    %733 = vmatpush.xpose.msra.mxu0 0.0
    %734 = vmatpush.xpose.msra.mxu0 0.0
    %735 = vmatpush.xpose.msra.mxu0 0.0
    %736 = vmatpush.xpose.msra.mxu0 0.0
    %737 = vmatpush.xpose.msra.mxu0 0.0
    %738 = vmatpush.xpose.msra.mxu0 0.0
    %739 = vmatpush.xpose.msra.mxu0 0.0
    %740 = vmatpush.xpose.msra.mxu0 0.0
    %741 = vmatpush.xpose.msra.mxu0 0.0
    %742 = vmatpush.xpose.msra.mxu0 0.0
    %743 = vmatpush.xpose.msra.mxu0 0.0
    %744 = vmatpush.xpose.msra.mxu0 0.0
    %745 = vmatpush.xpose.msra.mxu0 %v728
    %746 = vmatmul.f32.gmra.mxu0 %v725
    %v747 = vpop.f32.mrf.mxu0
    %v748 = vadd.f32 0.0, %v747
    %749 = vdwg.mxu0
    %v750 = vmul.f32 %v748, 0.35355338
    %v751 = vmin.f32 %v750, %v110
    %v752 = vsel %vm221, %v751, -inf
    %753 = vmax.xlane.f32.xlu0 %v752
    %v754 = vpop.xlane.xlu0 %753
    %v755 = vsub.f32 %v751, %v754
    %v756 = vmul.f32 %v755, 1.442695
    %v757 = vpow.pop %v756
    %v758 = vsel %vm221, %v757, 0.0
    %759 = vadd.xlane.f32.xlu0 %v758
    %v760 = vpop.xlane.xlu0 %759
    %v761 = vrcp.pop %v760
    %v762 = vmul.f32 %v760, %v761
    %v763 = vsub.f32 1.0, %v762
    %v764 = vmul.f32 %v761, %v763
    %v765 = vadd.f32 %v761, %v764
    %vm766 = vweird.f32 %v760
    %vm767 = vweird.f32 %v761
    %vm768 = vmor %vm766, %vm767
    %v769 = vsel %vm768, %v761, %v765
    %v770 = vand.u32 2147483647, %v760
    %vm771 = vcmp.eq.f32.partialorder %v770, 8.507059e+37
    %v772 = vand.u32 %v760, 2147483648
    %v773 = vor.u32 1.1754944e-38, %v772
    %v774 = vsel %vm771, %v773, %v769
    %v775 = vmul.f32 %v757, %v774
    %v777 = vsel %vm221, %v775, 0
    %779 = vmatpush.msra.mxu0 0.0
    %780 = vmatpush.msra.mxu0 0.0
    %781 = vmatpush.msra.mxu0 0.0
    %782 = vmatpush.msra.mxu0 0.0
    %783 = vmatpush.msra.mxu0 0.0
    %784 = vmatpush.msra.mxu0 0.0
    %785 = vmatpush.msra.mxu0 0.0
    %786 = vmatpush.msra.mxu0 0.0
    %787 = vmatpush.msra.mxu0 0.0
    %788 = vmatpush.msra.mxu0 0.0
    %789 = vmatpush.msra.mxu0 0.0
    %790 = vmatpush.msra.mxu0 0.0
    %791 = vmatpush.msra.mxu0 0.0
    %792 = vmatpush.msra.mxu0 0.0
    %793 = vmatpush.msra.mxu0 0.0
    %794 = vmatpush.msra.mxu0 %v722
    %795 = vmatmul.f32.gmra.mxu0 %v777
    %v796 = vpop.f32.mrf.mxu0
    %v797 = vadd.f32 0.0, %v796
    %798 = vdwg.mxu0
    %v800 = vsel %vm221, %v797, 0
    %802 = vmatpush.msra.mxu0 0.0
    %803 = vmatpush.msra.mxu0 0.0
    %804 = vmatpush.msra.mxu0 0.0
    %805 = vmatpush.msra.mxu0 0.0
    %806 = vmatpush.msra.mxu0 0.0
    %807 = vmatpush.msra.mxu0 0.0
    %808 = vmatpush.msra.mxu0 0.0
    %809 = vmatpush.msra.mxu0 0.0
    %810 = vmatpush.msra.mxu0 0.0
    %811 = vmatpush.msra.mxu0 0.0
    %812 = vmatpush.msra.mxu0 0.0
    %813 = vmatpush.msra.mxu0 0.0
    %814 = vmatpush.msra.mxu0 0.0
    %815 = vmatpush.msra.mxu0 0.0
    %816 = vmatpush.msra.mxu0 0.0
    %817 = vmatpush.msra.mxu0 %v108
    %818 = vmatmul.f32.gmra.mxu0 %v800
    %v819 = vpop.f32.mrf.mxu0
    %v820 = vadd.f32 0.0, %v819
    %821 = vdwg.mxu0
    %v822 = vadd.f32 %v654, %v820
    %v824 = vperm.slane %v44, 0
    %v826 = vadd.f32 %v822, %v824
    %v827 = vadd.f32 %v109, %v826
    %828 = vst.msk [vmem:[#allocation2] sm:$0xff] %vm111, %v827
    %s829 = scalar_lea.vmem %s0, 8
    %v830 = vld [vmem:[%s829] sm:$0xff]
    %s831 = scalar_lea.vmem %s1, 8
    %v832 = vld [vmem:[%s831] sm:$0xff]
    %v833 = vsel %vm111, %v830, 0.0
    %834 = vadd.xlane.f32.xlu0 %v833
    %v835 = vpop.xlane.xlu0 %834
    %v836 = vmul.f32 %v835, %v121
    %v837 = vsub.f32 %v830, %v836
    %v838 = vmul.f32 %v837, %v837
    %v839 = vsel %vm111, %v838, 0.0
    %840 = vadd.xlane.f32.xlu0 %v839
    %v841 = vpop.xlane.xlu0 %840
    %v842 = vmul.f32 %v841, %v121
    %v843 = vadd.f32 %v842, 1e-06
    %v844 = vrsqrt.pop %v843
    %v845 = vmul.f32 %v844, %v843
    %v846 = vmul.f32 %v845, %v844
    %v847 = vmul.f32 0.5, %v846
    %v848 = vsub.f32 1.5, %v847
    %v849 = vmul.f32 %v844, %v848
    %vm850 = vweird.f32 %v843
    %vm851 = vweird.f32 %v844
    %vm852 = vmor %vm850, %vm851
    %v853 = vsel %vm852, %v844, %v849
    %v854 = vmul.f32 %v837, %v853
    %v855 = vmul.f32 %v854, %v142
    %v856 = vadd.f32 %v855, %v146
    %v858 = vsel %vm111, %v856, 0
    %860 = vmatpush.msra.mxu0 0.0
    %861 = vmatpush.msra.mxu0 0.0
    %862 = vmatpush.msra.mxu0 0.0
    %863 = vmatpush.msra.mxu0 0.0
    %864 = vmatpush.msra.mxu0 0.0
    %865 = vmatpush.msra.mxu0 0.0
    %866 = vmatpush.msra.mxu0 0.0
    %867 = vmatpush.msra.mxu0 0.0
    %868 = vmatpush.msra.mxu0 0.0
    %869 = vmatpush.msra.mxu0 0.0
    %870 = vmatpush.msra.mxu0 0.0
    %871 = vmatpush.msra.mxu0 0.0
    %872 = vmatpush.msra.mxu0 %v48
    %873 = vmatpush.msra.mxu0 %v47
    %874 = vmatpush.msra.mxu0 %v46
    %875 = vmatpush.msra.mxu0 %v45
    %876 = vmatmul.f32.gmra.mxu0 %v858
    %v877 = vpop.f32.mrf.mxu0
    %v878 = vadd.f32 %v150, %v877
    %879 = vdwg.mxu0
    %880 = vmatpush.msra.mxu0 0.0
    %881 = vmatpush.msra.mxu0 0.0
    %882 = vmatpush.msra.mxu0 0.0
    %883 = vmatpush.msra.mxu0 0.0
    %884 = vmatpush.msra.mxu0 0.0
    %885 = vmatpush.msra.mxu0 0.0
    %886 = vmatpush.msra.mxu0 0.0
    %887 = vmatpush.msra.mxu0 0.0
    %888 = vmatpush.msra.mxu0 0.0
    %889 = vmatpush.msra.mxu0 0.0
    %890 = vmatpush.msra.mxu0 0.0
    %891 = vmatpush.msra.mxu0 0.0
    %892 = vmatpush.msra.mxu0 %v68
    %893 = vmatpush.msra.mxu0 %v67
    %894 = vmatpush.msra.mxu0 %v66
    %895 = vmatpush.msra.mxu0 %v65
    %896 = vmatmul.f32.gmra.mxu0 %v858
    %v897 = vpop.f32.mrf.mxu0
    %v898 = vadd.f32 %v176, %v897
    %899 = vdwg.mxu0
    %900 = vmatpush.msra.mxu0 0.0
    %901 = vmatpush.msra.mxu0 0.0
    %902 = vmatpush.msra.mxu0 0.0
    %903 = vmatpush.msra.mxu0 0.0
    %904 = vmatpush.msra.mxu0 0.0
    %905 = vmatpush.msra.mxu0 0.0
    %906 = vmatpush.msra.mxu0 0.0
    %907 = vmatpush.msra.mxu0 0.0
    %908 = vmatpush.msra.mxu0 0.0
    %909 = vmatpush.msra.mxu0 0.0
    %910 = vmatpush.msra.mxu0 0.0
    %911 = vmatpush.msra.mxu0 0.0
    %912 = vmatpush.msra.mxu0 %v88
    %913 = vmatpush.msra.mxu0 %v87
    %914 = vmatpush.msra.mxu0 %v86
    %915 = vmatpush.msra.mxu0 %v85
    %916 = vmatmul.f32.gmra.mxu0 %v858
    %v917 = vpop.f32.mrf.mxu0
    %v918 = vadd.f32 %v199, %v917
    %919 = vdwg.mxu0
    %v921 = vsel %vm221, %v878, 0
    %v924 = vsel %vm221, %v898, 0
    %926 = vmatpush.xpose.msra.mxu0 0.0
    %927 = vmatpush.xpose.msra.mxu0 0.0
    %928 = vmatpush.xpose.msra.mxu0 0.0
    %929 = vmatpush.xpose.msra.mxu0 0.0
    %930 = vmatpush.xpose.msra.mxu0 0.0
    %931 = vmatpush.xpose.msra.mxu0 0.0
    %932 = vmatpush.xpose.msra.mxu0 0.0
    %933 = vmatpush.xpose.msra.mxu0 0.0
    %934 = vmatpush.xpose.msra.mxu0 0.0
    %935 = vmatpush.xpose.msra.mxu0 0.0
    %936 = vmatpush.xpose.msra.mxu0 0.0
    %937 = vmatpush.xpose.msra.mxu0 0.0
    %938 = vmatpush.xpose.msra.mxu0 0.0
    %939 = vmatpush.xpose.msra.mxu0 0.0
    %940 = vmatpush.xpose.msra.mxu0 0.0
    %941 = vmatpush.xpose.msra.mxu0 %v924
    %942 = vmatmul.f32.gmra.mxu0 %v921
    %v943 = vpop.f32.mrf.mxu0
    %v944 = vadd.f32 0.0, %v943
    %945 = vdwg.mxu0
    %v946 = vmul.f32 %v944, 0.35355338
    %v947 = vmin.f32 %v946, %v832
    %v948 = vsel %vm221, %v947, -inf
    %949 = vmax.xlane.f32.xlu0 %v948
    %v950 = vpop.xlane.xlu0 %949
    %v951 = vsub.f32 %v947, %v950
    %v952 = vmul.f32 %v951, 1.442695
    %v953 = vpow.pop %v952
    %v954 = vsel %vm221, %v953, 0.0
    %955 = vadd.xlane.f32.xlu0 %v954
    %v956 = vpop.xlane.xlu0 %955
    %v957 = vrcp.pop %v956
    %v958 = vmul.f32 %v956, %v957
    %v959 = vsub.f32 1.0, %v958
    %v960 = vmul.f32 %v957, %v959
    %v961 = vadd.f32 %v957, %v960
    %vm962 = vweird.f32 %v956
    %vm963 = vweird.f32 %v957
    %vm964 = vmor %vm962, %vm963
    %v965 = vsel %vm964, %v957, %v961
    %v966 = vand.u32 2147483647, %v956
    %vm967 = vcmp.eq.f32.partialorder %v966, 8.507059e+37
    %v968 = vand.u32 %v956, 2147483648
    %v969 = vor.u32 1.1754944e-38, %v968
    %v970 = vsel %vm967, %v969, %v965
    %v971 = vmul.f32 %v953, %v970
    %v973 = vsel %vm221, %v971, 0
    %975 = vmatpush.msra.mxu0 0.0
    %976 = vmatpush.msra.mxu0 0.0
    %977 = vmatpush.msra.mxu0 0.0
    %978 = vmatpush.msra.mxu0 0.0
    %979 = vmatpush.msra.mxu0 0.0
    %980 = vmatpush.msra.mxu0 0.0
    %981 = vmatpush.msra.mxu0 0.0
    %982 = vmatpush.msra.mxu0 0.0
    %983 = vmatpush.msra.mxu0 0.0
    %984 = vmatpush.msra.mxu0 0.0
    %985 = vmatpush.msra.mxu0 0.0
    %986 = vmatpush.msra.mxu0 0.0
    %987 = vmatpush.msra.mxu0 0.0
    %988 = vmatpush.msra.mxu0 0.0
    %989 = vmatpush.msra.mxu0 0.0
    %990 = vmatpush.msra.mxu0 %v918
    %991 = vmatmul.f32.gmra.mxu0 %v973
    %v992 = vpop.f32.mrf.mxu0
    %v993 = vadd.f32 0.0, %v992
    %994 = vdwg.mxu0
    %995 = vmatpush.msra.mxu0 0.0
    %996 = vmatpush.msra.mxu0 0.0
    %997 = vmatpush.msra.mxu0 0.0
    %998 = vmatpush.msra.mxu0 0.0
    %999 = vmatpush.msra.mxu0 0.0
    %1000 = vmatpush.msra.mxu0 0.0
    %1001 = vmatpush.msra.mxu0 0.0
    %1002 = vmatpush.msra.mxu0 0.0
    %1003 = vmatpush.msra.mxu0 0.0
    %1004 = vmatpush.msra.mxu0 0.0
    %1005 = vmatpush.msra.mxu0 0.0
    %1006 = vmatpush.msra.mxu0 0.0
    %1007 = vmatpush.msra.mxu0 %v52
    %1008 = vmatpush.msra.mxu0 %v51
    %1009 = vmatpush.msra.mxu0 %v50
    %1010 = vmatpush.msra.mxu0 %v49
    %1011 = vmatmul.f32.gmra.mxu0 %v858
    %v1012 = vpop.f32.mrf.mxu0
    %v1013 = vadd.f32 %v298, %v1012
    %1014 = vdwg.mxu0
    %1015 = vmatpush.msra.mxu0 0.0
    %1016 = vmatpush.msra.mxu0 0.0
    %1017 = vmatpush.msra.mxu0 0.0
    %1018 = vmatpush.msra.mxu0 0.0
    %1019 = vmatpush.msra.mxu0 0.0
    %1020 = vmatpush.msra.mxu0 0.0
    %1021 = vmatpush.msra.mxu0 0.0
    %1022 = vmatpush.msra.mxu0 0.0
    %1023 = vmatpush.msra.mxu0 0.0
    %1024 = vmatpush.msra.mxu0 0.0
    %1025 = vmatpush.msra.mxu0 0.0
    %1026 = vmatpush.msra.mxu0 0.0
    %1027 = vmatpush.msra.mxu0 %v72
    %1028 = vmatpush.msra.mxu0 %v71
    %1029 = vmatpush.msra.mxu0 %v70
    %1030 = vmatpush.msra.mxu0 %v69
    %1031 = vmatmul.f32.gmra.mxu0 %v858
    %v1032 = vpop.f32.mrf.mxu0
    %v1033 = vadd.f32 %v321, %v1032
    %1034 = vdwg.mxu0
    %1035 = vmatpush.msra.mxu0 0.0
    %1036 = vmatpush.msra.mxu0 0.0
    %1037 = vmatpush.msra.mxu0 0.0
    %1038 = vmatpush.msra.mxu0 0.0
    %1039 = vmatpush.msra.mxu0 0.0
    %1040 = vmatpush.msra.mxu0 0.0
    %1041 = vmatpush.msra.mxu0 0.0
    %1042 = vmatpush.msra.mxu0 0.0
    %1043 = vmatpush.msra.mxu0 0.0
    %1044 = vmatpush.msra.mxu0 0.0
    %1045 = vmatpush.msra.mxu0 0.0
    %1046 = vmatpush.msra.mxu0 0.0
    %1047 = vmatpush.msra.mxu0 %v92
    %1048 = vmatpush.msra.mxu0 %v91
    %1049 = vmatpush.msra.mxu0 %v90
    %1050 = vmatpush.msra.mxu0 %v89
    %1051 = vmatmul.f32.gmra.mxu0 %v858
    %v1052 = vpop.f32.mrf.mxu0
    %v1053 = vadd.f32 %v344, %v1052
    %1054 = vdwg.mxu0
    %v1056 = vsel %vm221, %v1013, 0
    %v1059 = vsel %vm221, %v1033, 0
    %1061 = vmatpush.xpose.msra.mxu0 0.0
    %1062 = vmatpush.xpose.msra.mxu0 0.0
    %1063 = vmatpush.xpose.msra.mxu0 0.0
    %1064 = vmatpush.xpose.msra.mxu0 0.0
    %1065 = vmatpush.xpose.msra.mxu0 0.0
    %1066 = vmatpush.xpose.msra.mxu0 0.0
    %1067 = vmatpush.xpose.msra.mxu0 0.0
    %1068 = vmatpush.xpose.msra.mxu0 0.0
    %1069 = vmatpush.xpose.msra.mxu0 0.0
    %1070 = vmatpush.xpose.msra.mxu0 0.0
    %1071 = vmatpush.xpose.msra.mxu0 0.0
    %1072 = vmatpush.xpose.msra.mxu0 0.0
    %1073 = vmatpush.xpose.msra.mxu0 0.0
    %1074 = vmatpush.xpose.msra.mxu0 0.0
    %1075 = vmatpush.xpose.msra.mxu0 0.0
    %1076 = vmatpush.xpose.msra.mxu0 %v1059
    %1077 = vmatmul.f32.gmra.mxu0 %v1056
    %v1078 = vpop.f32.mrf.mxu0
    %v1079 = vadd.f32 0.0, %v1078
    %1080 = vdwg.mxu0
    %v1081 = vmul.f32 %v1079, 0.35355338
    %v1082 = vmin.f32 %v1081, %v832
    %v1083 = vsel %vm221, %v1082, -inf
    %1084 = vmax.xlane.f32.xlu0 %v1083
    %v1085 = vpop.xlane.xlu0 %1084
    %v1086 = vsub.f32 %v1082, %v1085
    %v1087 = vmul.f32 %v1086, 1.442695
    %v1088 = vpow.pop %v1087
    %v1089 = vsel %vm221, %v1088, 0.0
    %1090 = vadd.xlane.f32.xlu0 %v1089
    %v1091 = vpop.xlane.xlu0 %1090
    %v1092 = vrcp.pop %v1091
    %v1093 = vmul.f32 %v1091, %v1092
    %v1094 = vsub.f32 1.0, %v1093
    %v1095 = vmul.f32 %v1092, %v1094
    %v1096 = vadd.f32 %v1092, %v1095
    %vm1097 = vweird.f32 %v1091
    %vm1098 = vweird.f32 %v1092
    %vm1099 = vmor %vm1097, %vm1098
    %v1100 = vsel %vm1099, %v1092, %v1096
    %v1101 = vand.u32 2147483647, %v1091
    %vm1102 = vcmp.eq.f32.partialorder %v1101, 8.507059e+37
    %v1103 = vand.u32 %v1091, 2147483648
    %v1104 = vor.u32 1.1754944e-38, %v1103
    %v1105 = vsel %vm1102, %v1104, %v1100
    %v1106 = vmul.f32 %v1088, %v1105
    %v1108 = vsel %vm221, %v1106, 0
    %1110 = vmatpush.msra.mxu0 0.0
    %1111 = vmatpush.msra.mxu0 0.0
    %1112 = vmatpush.msra.mxu0 0.0
    %1113 = vmatpush.msra.mxu0 0.0
    %1114 = vmatpush.msra.mxu0 0.0
    %1115 = vmatpush.msra.mxu0 0.0
    %1116 = vmatpush.msra.mxu0 0.0
    %1117 = vmatpush.msra.mxu0 0.0
    %1118 = vmatpush.msra.mxu0 0.0
    %1119 = vmatpush.msra.mxu0 0.0
    %1120 = vmatpush.msra.mxu0 0.0
    %1121 = vmatpush.msra.mxu0 0.0
    %1122 = vmatpush.msra.mxu0 0.0
    %1123 = vmatpush.msra.mxu0 0.0
    %1124 = vmatpush.msra.mxu0 0.0
    %1125 = vmatpush.msra.mxu0 %v1053
    %1126 = vmatmul.f32.gmra.mxu0 %v1108
    %v1127 = vpop.f32.mrf.mxu0
    %v1128 = vadd.f32 0.0, %v1127
    %1129 = vdwg.mxu0
    %v1131 = vsel %vm221, %v1128, 0
    %1133 = vmatpush.msra.mxu0 0.0
    %1134 = vmatpush.msra.mxu0 0.0
    %1135 = vmatpush.msra.mxu0 0.0
    %1136 = vmatpush.msra.mxu0 0.0
    %1137 = vmatpush.msra.mxu0 0.0
    %1138 = vmatpush.msra.mxu0 0.0
    %1139 = vmatpush.msra.mxu0 0.0
    %1140 = vmatpush.msra.mxu0 0.0
    %1141 = vmatpush.msra.mxu0 0.0
    %1142 = vmatpush.msra.mxu0 0.0
    %1143 = vmatpush.msra.mxu0 0.0
    %1144 = vmatpush.msra.mxu0 0.0
    %1145 = vmatpush.msra.mxu0 0.0
    %1146 = vmatpush.msra.mxu0 0.0
    %1147 = vmatpush.msra.mxu0 0.0
    %1148 = vmatpush.msra.mxu0 %v106
    %1149 = vmatmul.f32.gmra.mxu0 %v1131
    %v1150 = vpop.f32.mrf.mxu0
    %v1151 = vadd.f32 0.0, %v1150
    %1152 = vdwg.mxu0
    %v1154 = vsel %vm221, %v993, 0
    %1156 = vmatpush.msra.mxu0 0.0
    %1157 = vmatpush.msra.mxu0 0.0
    %1158 = vmatpush.msra.mxu0 0.0
    %1159 = vmatpush.msra.mxu0 0.0
    %1160 = vmatpush.msra.mxu0 0.0
    %1161 = vmatpush.msra.mxu0 0.0
    %1162 = vmatpush.msra.mxu0 0.0
    %1163 = vmatpush.msra.mxu0 0.0
    %1164 = vmatpush.msra.mxu0 0.0
    %1165 = vmatpush.msra.mxu0 0.0
    %1166 = vmatpush.msra.mxu0 0.0
    %1167 = vmatpush.msra.mxu0 0.0
    %1168 = vmatpush.msra.mxu0 0.0
    %1169 = vmatpush.msra.mxu0 0.0
    %1170 = vmatpush.msra.mxu0 0.0
    %1171 = vmatpush.msra.mxu0 %v105
    %1172 = vmatmul.f32.gmra.mxu0 %v1154
    %v1173 = vpop.f32.mrf.mxu0
    %v1174 = vadd.f32 %v1151, %v1173
    %1175 = vdwg.mxu0
    %1176 = vmatpush.msra.mxu0 0.0
    %1177 = vmatpush.msra.mxu0 0.0
    %1178 = vmatpush.msra.mxu0 0.0
    %1179 = vmatpush.msra.mxu0 0.0
    %1180 = vmatpush.msra.mxu0 0.0
    %1181 = vmatpush.msra.mxu0 0.0
    %1182 = vmatpush.msra.mxu0 0.0
    %1183 = vmatpush.msra.mxu0 0.0
    %1184 = vmatpush.msra.mxu0 0.0
    %1185 = vmatpush.msra.mxu0 0.0
    %1186 = vmatpush.msra.mxu0 0.0
    %1187 = vmatpush.msra.mxu0 0.0
    %1188 = vmatpush.msra.mxu0 %v56
    %1189 = vmatpush.msra.mxu0 %v55
    %1190 = vmatpush.msra.mxu0 %v54
    %1191 = vmatpush.msra.mxu0 %v53
    %1192 = vmatmul.f32.gmra.mxu0 %v858
    %v1193 = vpop.f32.mrf.mxu0
    %v1194 = vadd.f32 %v488, %v1193
    %1195 = vdwg.mxu0
    %1196 = vmatpush.msra.mxu0 0.0
    %1197 = vmatpush.msra.mxu0 0.0
    %1198 = vmatpush.msra.mxu0 0.0
    %1199 = vmatpush.msra.mxu0 0.0
    %1200 = vmatpush.msra.mxu0 0.0
    %1201 = vmatpush.msra.mxu0 0.0
    %1202 = vmatpush.msra.mxu0 0.0
    %1203 = vmatpush.msra.mxu0 0.0
    %1204 = vmatpush.msra.mxu0 0.0
    %1205 = vmatpush.msra.mxu0 0.0
    %1206 = vmatpush.msra.mxu0 0.0
    %1207 = vmatpush.msra.mxu0 0.0
    %1208 = vmatpush.msra.mxu0 %v76
    %1209 = vmatpush.msra.mxu0 %v75
    %1210 = vmatpush.msra.mxu0 %v74
    %1211 = vmatpush.msra.mxu0 %v73
    %1212 = vmatmul.f32.gmra.mxu0 %v858
    %v1213 = vpop.f32.mrf.mxu0
    %v1214 = vadd.f32 %v511, %v1213
    %1215 = vdwg.mxu0
    %1216 = vmatpush.msra.mxu0 0.0
    %1217 = vmatpush.msra.mxu0 0.0
    %1218 = vmatpush.msra.mxu0 0.0
    %1219 = vmatpush.msra.mxu0 0.0
    %1220 = vmatpush.msra.mxu0 0.0
    %1221 = vmatpush.msra.mxu0 0.0
    %1222 = vmatpush.msra.mxu0 0.0
    %1223 = vmatpush.msra.mxu0 0.0
    %1224 = vmatpush.msra.mxu0 0.0
    %1225 = vmatpush.msra.mxu0 0.0
    %1226 = vmatpush.msra.mxu0 0.0
    %1227 = vmatpush.msra.mxu0 0.0
    %1228 = vmatpush.msra.mxu0 %v96
    %1229 = vmatpush.msra.mxu0 %v95
    %1230 = vmatpush.msra.mxu0 %v94
    %1231 = vmatpush.msra.mxu0 %v93
    %1232 = vmatmul.f32.gmra.mxu0 %v858
    %v1233 = vpop.f32.mrf.mxu0
    %v1234 = vadd.f32 %v534, %v1233
    %1235 = vdwg.mxu0
    %v1237 = vsel %vm221, %v1194, 0
    %v1240 = vsel %vm221, %v1214, 0
    %1242 = vmatpush.xpose.msra.mxu0 0.0
    %1243 = vmatpush.xpose.msra.mxu0 0.0
    %1244 = vmatpush.xpose.msra.mxu0 0.0
    %1245 = vmatpush.xpose.msra.mxu0 0.0
    %1246 = vmatpush.xpose.msra.mxu0 0.0
    %1247 = vmatpush.xpose.msra.mxu0 0.0
    %1248 = vmatpush.xpose.msra.mxu0 0.0
    %1249 = vmatpush.xpose.msra.mxu0 0.0
    %1250 = vmatpush.xpose.msra.mxu0 0.0
    %1251 = vmatpush.xpose.msra.mxu0 0.0
    %1252 = vmatpush.xpose.msra.mxu0 0.0
    %1253 = vmatpush.xpose.msra.mxu0 0.0
    %1254 = vmatpush.xpose.msra.mxu0 0.0
    %1255 = vmatpush.xpose.msra.mxu0 0.0
    %1256 = vmatpush.xpose.msra.mxu0 0.0
    %1257 = vmatpush.xpose.msra.mxu0 %v1240
    %1258 = vmatmul.f32.gmra.mxu0 %v1237
    %v1259 = vpop.f32.mrf.mxu0
    %v1260 = vadd.f32 0.0, %v1259
    %1261 = vdwg.mxu0
    %v1262 = vmul.f32 %v1260, 0.35355338
    %v1263 = vmin.f32 %v1262, %v832
    %v1264 = vsel %vm221, %v1263, -inf
    %1265 = vmax.xlane.f32.xlu0 %v1264
    %v1266 = vpop.xlane.xlu0 %1265
    %v1267 = vsub.f32 %v1263, %v1266
    %v1268 = vmul.f32 %v1267, 1.442695
    %v1269 = vpow.pop %v1268
    %v1270 = vsel %vm221, %v1269, 0.0
    %1271 = vadd.xlane.f32.xlu0 %v1270
    %v1272 = vpop.xlane.xlu0 %1271
    %v1273 = vrcp.pop %v1272
    %v1274 = vmul.f32 %v1272, %v1273
    %v1275 = vsub.f32 1.0, %v1274
    %v1276 = vmul.f32 %v1273, %v1275
    %v1277 = vadd.f32 %v1273, %v1276
    %vm1278 = vweird.f32 %v1272
    %vm1279 = vweird.f32 %v1273
    %vm1280 = vmor %vm1278, %vm1279
    %v1281 = vsel %vm1280, %v1273, %v1277
    %v1282 = vand.u32 2147483647, %v1272
    %vm1283 = vcmp.eq.f32.partialorder %v1282, 8.507059e+37
    %v1284 = vand.u32 %v1272, 2147483648
    %v1285 = vor.u32 1.1754944e-38, %v1284
    %v1286 = vsel %vm1283, %v1285, %v1281
    %v1287 = vmul.f32 %v1269, %v1286
    %v1289 = vsel %vm221, %v1287, 0
    %1291 = vmatpush.msra.mxu0 0.0
    %1292 = vmatpush.msra.mxu0 0.0
    %1293 = vmatpush.msra.mxu0 0.0
    %1294 = vmatpush.msra.mxu0 0.0
    %1295 = vmatpush.msra.mxu0 0.0
    %1296 = vmatpush.msra.mxu0 0.0
    %1297 = vmatpush.msra.mxu0 0.0
    %1298 = vmatpush.msra.mxu0 0.0
    %1299 = vmatpush.msra.mxu0 0.0
    %1300 = vmatpush.msra.mxu0 0.0
    %1301 = vmatpush.msra.mxu0 0.0
    %1302 = vmatpush.msra.mxu0 0.0
    %1303 = vmatpush.msra.mxu0 0.0
    %1304 = vmatpush.msra.mxu0 0.0
    %1305 = vmatpush.msra.mxu0 0.0
    %1306 = vmatpush.msra.mxu0 %v1234
    %1307 = vmatmul.f32.gmra.mxu0 %v1289
    %v1308 = vpop.f32.mrf.mxu0
    %v1309 = vadd.f32 0.0, %v1308
    %1310 = vdwg.mxu0
    %v1312 = vsel %vm221, %v1309, 0
    %1314 = vmatpush.msra.mxu0 0.0
    %1315 = vmatpush.msra.mxu0 0.0
    %1316 = vmatpush.msra.mxu0 0.0
    %1317 = vmatpush.msra.mxu0 0.0
    %1318 = vmatpush.msra.mxu0 0.0
    %1319 = vmatpush.msra.mxu0 0.0
    %1320 = vmatpush.msra.mxu0 0.0
    %1321 = vmatpush.msra.mxu0 0.0
    %1322 = vmatpush.msra.mxu0 0.0
    %1323 = vmatpush.msra.mxu0 0.0
    %1324 = vmatpush.msra.mxu0 0.0
    %1325 = vmatpush.msra.mxu0 0.0
    %1326 = vmatpush.msra.mxu0 0.0
    %1327 = vmatpush.msra.mxu0 0.0
    %1328 = vmatpush.msra.mxu0 0.0
    %1329 = vmatpush.msra.mxu0 %v107
    %1330 = vmatmul.f32.gmra.mxu0 %v1312
    %v1331 = vpop.f32.mrf.mxu0
    %v1332 = vadd.f32 0.0, %v1331
    %1333 = vdwg.mxu0
    %v1334 = vadd.f32 %v1174, %v1332
    %1335 = vmatpush.msra.mxu0 0.0
    %1336 = vmatpush.msra.mxu0 0.0
    %1337 = vmatpush.msra.mxu0 0.0
    %1338 = vmatpush.msra.mxu0 0.0
    %1339 = vmatpush.msra.mxu0 0.0
    %1340 = vmatpush.msra.mxu0 0.0
    %1341 = vmatpush.msra.mxu0 0.0
    %1342 = vmatpush.msra.mxu0 0.0
    %1343 = vmatpush.msra.mxu0 0.0
    %1344 = vmatpush.msra.mxu0 0.0
    %1345 = vmatpush.msra.mxu0 0.0
    %1346 = vmatpush.msra.mxu0 0.0
    %1347 = vmatpush.msra.mxu0 %v60
    %1348 = vmatpush.msra.mxu0 %v59
    %1349 = vmatpush.msra.mxu0 %v58
    %1350 = vmatpush.msra.mxu0 %v57
    %1351 = vmatmul.f32.gmra.mxu0 %v858
    %v1352 = vpop.f32.mrf.mxu0
    %v1353 = vadd.f32 %v656, %v1352
    %1354 = vdwg.mxu0
    %1355 = vmatpush.msra.mxu0 0.0
    %1356 = vmatpush.msra.mxu0 0.0
    %1357 = vmatpush.msra.mxu0 0.0
    %1358 = vmatpush.msra.mxu0 0.0
    %1359 = vmatpush.msra.mxu0 0.0
    %1360 = vmatpush.msra.mxu0 0.0
    %1361 = vmatpush.msra.mxu0 0.0
    %1362 = vmatpush.msra.mxu0 0.0
    %1363 = vmatpush.msra.mxu0 0.0
    %1364 = vmatpush.msra.mxu0 0.0
    %1365 = vmatpush.msra.mxu0 0.0
    %1366 = vmatpush.msra.mxu0 0.0
    %1367 = vmatpush.msra.mxu0 %v80
    %1368 = vmatpush.msra.mxu0 %v79
    %1369 = vmatpush.msra.mxu0 %v78
    %1370 = vmatpush.msra.mxu0 %v77
    %1371 = vmatmul.f32.gmra.mxu0 %v858
    %v1372 = vpop.f32.mrf.mxu0
    %v1373 = vadd.f32 %v679, %v1372
    %1374 = vdwg.mxu0
    %1375 = vmatpush.msra.mxu0 0.0
    %1376 = vmatpush.msra.mxu0 0.0
    %1377 = vmatpush.msra.mxu0 0.0
    %1378 = vmatpush.msra.mxu0 0.0
    %1379 = vmatpush.msra.mxu0 0.0
    %1380 = vmatpush.msra.mxu0 0.0
    %1381 = vmatpush.msra.mxu0 0.0
    %1382 = vmatpush.msra.mxu0 0.0
    %1383 = vmatpush.msra.mxu0 0.0
    %1384 = vmatpush.msra.mxu0 0.0
    %1385 = vmatpush.msra.mxu0 0.0
    %1386 = vmatpush.msra.mxu0 0.0
    %1387 = vmatpush.msra.mxu0 %v100
    %1388 = vmatpush.msra.mxu0 %v99
    %1389 = vmatpush.msra.mxu0 %v98
    %1390 = vmatpush.msra.mxu0 %v97
    %1391 = vmatmul.f32.gmra.mxu0 %v858
    %v1392 = vpop.f32.mrf.mxu0
    %v1393 = vadd.f32 %v702, %v1392
    %1394 = vdwg.mxu0
    %v1396 = vsel %vm221, %v1353, 0
    %v1399 = vsel %vm221, %v1373, 0
    %1401 = vmatpush.xpose.msra.mxu0 0.0
    %1402 = vmatpush.xpose.msra.mxu0 0.0
    %1403 = vmatpush.xpose.msra.mxu0 0.0
    %1404 = vmatpush.xpose.msra.mxu0 0.0
    %1405 = vmatpush.xpose.msra.mxu0 0.0
    %1406 = vmatpush.xpose.msra.mxu0 0.0
    %1407 = vmatpush.xpose.msra.mxu0 0.0
    %1408 = vmatpush.xpose.msra.mxu0 0.0
    %1409 = vmatpush.xpose.msra.mxu0 0.0
    %1410 = vmatpush.xpose.msra.mxu0 0.0
    %1411 = vmatpush.xpose.msra.mxu0 0.0
    %1412 = vmatpush.xpose.msra.mxu0 0.0
    %1413 = vmatpush.xpose.msra.mxu0 0.0
    %1414 = vmatpush.xpose.msra.mxu0 0.0
    %1415 = vmatpush.xpose.msra.mxu0 0.0
    %1416 = vmatpush.xpose.msra.mxu0 %v1399
    %1417 = vmatmul.f32.gmra.mxu0 %v1396
    %v1418 = vpop.f32.mrf.mxu0
    %v1419 = vadd.f32 0.0, %v1418
    %1420 = vdwg.mxu0
    %v1421 = vmul.f32 %v1419, 0.35355338
    %v1422 = vmin.f32 %v1421, %v832
    %v1423 = vsel %vm221, %v1422, -inf
    %1424 = vmax.xlane.f32.xlu0 %v1423
    %v1425 = vpop.xlane.xlu0 %1424
    %v1426 = vsub.f32 %v1422, %v1425
    %v1427 = vmul.f32 %v1426, 1.442695
    %v1428 = vpow.pop %v1427
    %v1429 = vsel %vm221, %v1428, 0.0
    %1430 = vadd.xlane.f32.xlu0 %v1429
    %v1431 = vpop.xlane.xlu0 %1430
    %v1432 = vrcp.pop %v1431
    %v1433 = vmul.f32 %v1431, %v1432
    %v1434 = vsub.f32 1.0, %v1433
    %v1435 = vmul.f32 %v1432, %v1434
    %v1436 = vadd.f32 %v1432, %v1435
    %vm1437 = vweird.f32 %v1431
    %vm1438 = vweird.f32 %v1432
    %vm1439 = vmor %vm1437, %vm1438
    %v1440 = vsel %vm1439, %v1432, %v1436
    %v1441 = vand.u32 2147483647, %v1431
    %vm1442 = vcmp.eq.f32.partialorder %v1441, 8.507059e+37
    %v1443 = vand.u32 %v1431, 2147483648
    %v1444 = vor.u32 1.1754944e-38, %v1443
    %v1445 = vsel %vm1442, %v1444, %v1440
    %v1446 = vmul.f32 %v1428, %v1445
    %v1448 = vsel %vm221, %v1446, 0
    %1450 = vmatpush.msra.mxu0 0.0
    %1451 = vmatpush.msra.mxu0 0.0
    %1452 = vmatpush.msra.mxu0 0.0
    %1453 = vmatpush.msra.mxu0 0.0
    %1454 = vmatpush.msra.mxu0 0.0
    %1455 = vmatpush.msra.mxu0 0.0
    %1456 = vmatpush.msra.mxu0 0.0
    %1457 = vmatpush.msra.mxu0 0.0
    %1458 = vmatpush.msra.mxu0 0.0
    %1459 = vmatpush.msra.mxu0 0.0
    %1460 = vmatpush.msra.mxu0 0.0
    %1461 = vmatpush.msra.mxu0 0.0
    %1462 = vmatpush.msra.mxu0 0.0
    %1463 = vmatpush.msra.mxu0 0.0
    %1464 = vmatpush.msra.mxu0 0.0
    %1465 = vmatpush.msra.mxu0 %v1393
    %1466 = vmatmul.f32.gmra.mxu0 %v1448
    %v1467 = vpop.f32.mrf.mxu0
    %v1468 = vadd.f32 0.0, %v1467
    %1469 = vdwg.mxu0
    %v1471 = vsel %vm221, %v1468, 0
    %1473 = vmatpush.msra.mxu0 0.0
    %1474 = vmatpush.msra.mxu0 0.0
    %1475 = vmatpush.msra.mxu0 0.0
    %1476 = vmatpush.msra.mxu0 0.0
    %1477 = vmatpush.msra.mxu0 0.0
    %1478 = vmatpush.msra.mxu0 0.0
    %1479 = vmatpush.msra.mxu0 0.0
    %1480 = vmatpush.msra.mxu0 0.0
    %1481 = vmatpush.msra.mxu0 0.0
    %1482 = vmatpush.msra.mxu0 0.0
    %1483 = vmatpush.msra.mxu0 0.0
    %1484 = vmatpush.msra.mxu0 0.0
    %1485 = vmatpush.msra.mxu0 0.0
    %1486 = vmatpush.msra.mxu0 0.0
    %1487 = vmatpush.msra.mxu0 0.0
    %1488 = vmatpush.msra.mxu0 %v108
    %1489 = vmatmul.f32.gmra.mxu0 %v1471
    %v1490 = vpop.f32.mrf.mxu0
    %v1491 = vadd.f32 0.0, %v1490
    %1492 = vdwg.mxu0
    %v1493 = vadd.f32 %v1334, %v1491
    %v1494 = vadd.f32 %v1493, %v824
    %v1495 = vadd.f32 %v830, %v1494
    %s1496 = scalar_lea.vmem [#allocation2], 8
    %1497 = vst.msk [vmem:[%s1496] sm:$0xff] %vm111, %v1495
    // Predicated region
    $region50: #{tpu_custom_call.1} parent=1 // pred_check
      _
    $region51: #{tpu_custom_call.1} parent=1 // pred_check_branch
      %1499 = sbr.rel (0) target = $region53
    $region52: #{tpu_custom_call.1} parent=1 // pred_region
      %1501 = vsyncadd [#allocation3], 0
      %s1502 = sshll.u32 [#allocation2], 4
      %s1503 = int_to_ptr.vmem [resolvable:$true] %s1502
      %s1504 = sshll.u32 %s12, 4
      %s1505 = int_to_ptr.hbm [resolvable:$true] %s1504
      %1510 = dma.vmem_to_hbm [thread:$0]  %s1503, 256, %s1505, [#allocation3], 128, 128, 8
    $region53: #{tpu_custom_call.1} parent=1 // pred_fallthru
      _
    // Predicated region
    $region54: #{tpu_custom_call.1} parent=1 // pred_check
      _
    $region55: #{tpu_custom_call.1} parent=1 // pred_check_branch
      %1512 = sbr.rel (0) target = $region57
    $region56: #{tpu_custom_call.1} parent=1 // pred_region
      %1514 = dma.done [#allocation3], 256
    $region57: #{tpu_custom_call.1} parent=1 // pred_fallthru
      _
    %1515 = vsyncpa [#allocation3], 1

</llo_original>
